<compile_context>
chip_gen: v6e
topology: v6e:2x2x1
jax: 0.10.0
libtpu: 0.0.40
codegen_flags: <defaults>
</compile_context>

<pallas_src>
import jax
import jax.numpy as jnp
from jax.experimental import pallas as pl
from jax.experimental.pallas import tpu as pltpu


def _cdiv(a, b):
    return -(-a // b)


def _round_up(x, m):
    return _cdiv(x, m) * m


def _nbytes(shape, dtype):
    n = 1
    for s in shape:
        n *= int(s)
    return n * jnp.dtype(dtype).itemsize


def _make_kernel(t_out_max, max_fsz):
    def kernel(emb_ref, w_ref, b_ref, mask_ref, lw_ref, lb_ref, out_ref):
        padded = emb_ref[...]                              # (bb, t_buf, dsz), time pre-padded

        # im2col built ONCE and shared by every tap of every filter width.
        x = jnp.concatenate(
            [padded[:, k:k + t_out_max, :] for k in range(max_fsz)], axis=-1
        )                                                  # (bb, t_out_max, max_fsz*dsz)

        # Single MXU matmul for all filters: K = max_fsz*dsz, N = total_c_pad, fp32 acc.
        acc = jnp.dot(x, w_ref[...], preferred_element_type=jnp.float32)

        # Mask conv positions past each filter's valid output length, then max over
        # time.  Bias + ReLU are folded through the max (exact: bias is
        # time-invariant, ReLU monotone, every filter has >= 1 valid position).
        acc = acc + mask_ref[...]                          # (t_out_max, C) broadcasts
        mot = jnp.max(acc, axis=1)                         # (bb, total_c_pad)
        feats = jnp.maximum(mot + b_ref[...], 0.0)         # Dropout is identity in eval

        # Classifier matmul in bf16 (full MXU rate), fp32 accumulation.
        logits = jnp.dot(feats.astype(lw_ref.dtype), lw_ref[...],
                         preferred_element_type=jnp.float32) + lb_ref[...]

        # Stable LogSoftmax over the lane-padded class dim; padded classes carry a
        # -1e30 bias so their exp() underflows to exactly 0 in the denominator.
        m = jnp.max(logits, axis=-1, keepdims=True)
        z = logits - m
        lse = jnp.log(jnp.sum(jnp.exp(z), axis=-1, keepdims=True))
        out_ref[...] = (z - lse).astype(out_ref.dtype)

    return kernel


def conv_model_forward(token_ids, lut, conv_ws, conv_bs, lin_w, lin_b, filtsz,
                       *, target_batch_block=256, param_dtype=jnp.bfloat16):
    """Eval-mode forward of ConvModel:
       Embedding -> [Conv1d+ReLU -> max-over-time]* -> concat -> Dropout(id)
       -> Linear -> LogSoftmax."""
    filtsz = tuple(int(f) for f in filtsz)
    B, T = token_ids.shape
    assert T >= 1  # bias/ReLU-through-max folding needs >=1 valid conv output per filter
    dsz = lut.shape[1]
    cmotsz = conv_ws[0].shape[-1]
    nf = len(filtsz)
    total_c = nf * cmotsz
    nc = lin_w.shape[1]

    max_fsz = max(filtsz)
    max_pad = max(f // 2 for f in filtsz)
    t_outs = tuple(T + 2 * (f // 2) - f + 1 for f in filtsz)   # PyTorch Conv1d lengths
    t_out_max = max(t_outs)
    # Buffer must hold every valid tap and every width-max_fsz im2col window.
    t_buf = max(T + 2 * max_pad, t_out_max - 1 + max_fsz)
    right_pad = t_buf - max_pad - T

    # Lane-dense channel / class dims (multiples of 128).
    total_c_pad = _round_up(total_c, 128)
    nc_pad = _round_up(nc, 128)

    # Combined, tap-padded conv weight (max_fsz*dsz, total_c_pad) in bf16, plus
    # combined bias and per-filter time-validity mask.  Padded channels have zero
    # weights / zero bias / all-valid mask -> exactly 0 after max+ReLU and are
    # multiplied by zero linear rows, so they are numerically neutral.
    # TODO(synk): if production dsz is not a multiple of 128, padding dsz of the
    # LUT / conv weights to 128 makes the in-kernel im2col slices lane-aligned at
    # the cost of extra HBM bytes; not done here (dsz is small).
    w_all = jnp.zeros((max_fsz, dsz, total_c_pad), param_dtype)
    b_all = jnp.zeros((1, total_c_pad), jnp.float32)
    mask = jnp.zeros((t_out_max, total_c_pad), jnp.float32)
    t_idx = jnp.arange(t_out_max, dtype=jnp.int32)[:, None]
    for j, (w, b, f, t_out) in enumerate(zip(conv_ws, conv_bs, filtsz, t_outs)):
        off = max_pad - f // 2
        c0 = j * cmotsz
        w_all = w_all.at[off:off + f, :, c0:c0 + cmotsz].set(w.astype(param_dtype))
        b_all = b_all.at[:, c0:c0 + cmotsz].set(b.reshape(1, cmotsz).astype(jnp.float32))
        mask = mask.at[:, c0:c0 + cmotsz].set(
            jnp.broadcast_to(jnp.where(t_idx < t_out, 0.0, -1e30),
                             (t_out_max, cmotsz)).astype(jnp.float32))
    w_all = w_all.reshape(max_fsz * dsz, total_c_pad)

    # Linear layer padded to (total_c_pad, nc_pad); padded classes get -1e30 bias.
    lin_w_p = jnp.zeros((total_c_pad, nc_pad), param_dtype)
    lin_w_p = lin_w_p.at[:total_c, :nc].set(lin_w.astype(param_dtype))
    lin_b_p = jnp.full((1, nc_pad), -1e30, jnp.float32)
    lin_b_p = lin_b_p.at[:, :nc].set(lin_b.reshape(1, nc).astype(jnp.float32))

    const_bytes = (_nbytes(w_all.shape, param_dtype)
                   + _nbytes(b_all.shape, jnp.float32)
                   + _nbytes(mask.shape, jnp.float32)
                   + _nbytes(lin_w_p.shape, param_dtype)
                   + _nbytes(lin_b_p.shape, jnp.float32))

    def resident_bytes(bb):
        # Double-buffered streamed blocks + double-buffered constants + the two big
        # in-kernel temporaries (im2col buffer, fp32 conv accumulator) + slack.
        return (2 * _nbytes((bb, t_buf, dsz), param_dtype)
                + 2 * _nbytes((bb, nc_pad), jnp.float32)
                + 2 * const_bytes
                + _nbytes((bb, t_out_max, max_fsz * dsz), param_dtype)
                + _nbytes((bb, t_out_max, total_c_pad), jnp.float32)
                + 4 * _nbytes((bb, total_c_pad), jnp.float32)
                + 4 * _nbytes((bb, nc_pad), jnp.float32))

    try:
        vmem_cap = int(pltpu.get_tpu_info().vmem_capacity_bytes)   # 128 MiB v5e/v6e, 64 MiB v7x
    except Exception:
        vmem_cap = 64 * 2**20                                      # assume smallest (v7x)
    budget = min(vmem_cap // 2, 96 * 2**20)

    # Large batch blocks amortize the ~0.35us/step grid overhead and grow the MXU
    # M-dim; keep >=2 grid steps when B > 8 so v7x's 2 TensorCores both get work.
    # B is padded up so bb always divides it (no prime-B cliff); padded rows are
    # sliced off at the end.
    nb = 1 if B <= 8 else max(2, _cdiv(B, target_batch_block))
    while True:
        bb = _round_up(_cdiv(B, nb), 8)
        if bb <= 8 or resident_bytes(bb) <= budget:
            break
        nb += 1
    B_pad = nb * bb
    vmem_limit = int(min(vmem_cap - 8 * 2**20,
                         max(32 * 2**20, 2 * resident_bytes(bb))))

    # Embedding gather + batch/time zero-padding in XLA (pre-padding in HBM removes
    # the per-step pad copy and its persistent scratch from the kernel).
    # TODO(synk): move the gather in-kernel via scalar-prefetched token ids + DMA
    # from an HBM LUT to avoid the (B,T,dsz) HBM round-trip (biggest win on v5e).
    emb = jnp.take(lut.astype(param_dtype), token_ids, axis=0)             # (B, T, dsz)
    emb = jnp.pad(emb, ((0, B_pad - B), (max_pad, right_pad), (0, 0)))     # (B_pad, t_buf, dsz)

    kernel = _make_kernel(t_out_max, max_fsz)

    flops = (2 * B_pad * t_out_max * (max_fsz * dsz) * total_c_pad
             + 2 * B_pad * total_c_pad * nc_pad)
    bytes_accessed = (_nbytes(emb.shape, param_dtype) + const_bytes
                      + _nbytes((B_pad, nc_pad), jnp.float32))

    out = pl.pallas_call(
        kernel,
        out_shape=jax.ShapeDtypeStruct((B_pad, nc_pad), jnp.float32),
        grid=(nb,),
        in_specs=[
            pl.BlockSpec((bb, t_buf, dsz), lambda i: (i, 0, 0)),           # emb (batch-tiled)
            # Constant-index operands below (could be pl.Buffered(1); ~0.1 MiB total
            # so left double-buffered for compile robustness).
            pl.BlockSpec((max_fsz * dsz, total_c_pad), lambda i: (0, 0)),  # combined conv weight
            pl.BlockSpec((1, total_c_pad), lambda i: (0, 0)),              # combined conv bias
            pl.BlockSpec((t_out_max, total_c_pad), lambda i: (0, 0)),      # time-validity mask
            pl.BlockSpec((total_c_pad, nc_pad), lambda i: (0, 0)),         # linear weight (padded)
            pl.BlockSpec((1, nc_pad), lambda i: (0, 0)),                   # linear bias (padded)
        ],
        out_specs=pl.BlockSpec((bb, nc_pad), lambda i: (i, 0)),
        compiler_params=pltpu.CompilerParams(
            dimension_semantics=("parallel",),
            vmem_limit_bytes=vmem_limit),
        cost_estimate=pl.CostEstimate(
            flops=int(flops), transcendentals=int(B_pad * nc_pad),
            bytes_accessed=int(bytes_accessed)),
    )(emb, w_all, b_all, mask, lin_w_p, lin_b_p)

    return out[:B, :nc]


def reference_forward(token_ids, lut, conv_ws, conv_bs, lin_w, lin_b, filtsz,
                      param_dtype=jnp.float32):
    """Pure-JAX reference mirroring the PyTorch forward (eval mode), with the same
    bf16 quantization of embeddings / conv weights / classifier weights as the
    kernel but the original op order."""
    emb = jnp.take(lut.astype(param_dtype), token_ids, axis=0)
    B, T, _ = emb.shape
    mots = []
    for w, b, fsz in zip(conv_ws, conv_bs, filtsz):
        pad = fsz // 2
        x = jnp.pad(emb, ((0, 0), (pad, pad), (0, 0)))
        t_out = T + 2 * pad - fsz + 1
        wq = w.astype(param_dtype)
        acc = jnp.zeros((B, t_out, w.shape[-1]), jnp.float32)
        for k in range(fsz):
            acc = acc + jnp.einsum('btd,dc->btc', x[:, k:k + t_out, :], wq[k],
                                   preferred_element_type=jnp.float32)
        acc = jnp.maximum(acc + b.astype(jnp.float32), 0.0)  # PyTorch order: bias+ReLU, then max
        mots.append(jnp.max(acc, axis=1))
    feats = jnp.concatenate(mots, axis=1)
    logits = (feats.astype(param_dtype).astype(jnp.float32)
              @ lin_w.astype(param_dtype).astype(jnp.float32)
              + lin_b.astype(jnp.float32).reshape(1, -1))
    return jax.nn.log_softmax(logits, axis=-1)


if __name__ == "__main__":
    # Small, forward-consistent shapes (B=16 so the batch grid runs 2 steps).
    B, T = 16, 8           # batch, sequence length
    vsz, dsz = 20, 32      # vocab size, embedding dim
    cmotsz = 32            # conv output channels per filter size
    filtsz = [3, 4, 5]     # filter widths (mixed odd/even exercises the time mask)
    nc = 4                 # number of labels

    key = jax.random.PRNGKey(0)
    keys = jax.random.split(key, 4 + 2 * len(filtsz))

    # Deterministic synthetic parameters (shapes match nn.Embedding / Conv1d / Linear).
    lut = 0.1 * jax.random.normal(keys[0], (vsz + 1, dsz), jnp.float32)
    conv_ws, conv_bs = [], []
    for i, fsz in enumerate(filtsz):
        # PyTorch Conv1d weight is (cmotsz, dsz, fsz); stored here as (fsz, dsz, cmotsz).
        conv_ws.append(0.1 * jax.random.normal(keys[1 + 2 * i], (fsz, dsz, cmotsz), jnp.float32))
        conv_bs.append(0.1 * jax.random.normal(keys[2 + 2 * i], (1, cmotsz), jnp.float32))
    input_dim = cmotsz * len(filtsz)
    # PyTorch Linear weight is (nc, input_dim); stored here as (input_dim, nc).
    lin_w = 0.1 * jax.random.normal(keys[-2], (input_dim, nc), jnp.float32)
    lin_b = 0.1 * jax.random.normal(keys[-1], (1, nc), jnp.float32)

    token_ids = jax.random.randint(key, (B, T), 0, vsz + 1)

    out = conv_model_forward(token_ids, lut, conv_ws, conv_bs, lin_w, lin_b, filtsz,
                             target_batch_block=256, param_dtype=jnp.bfloat16)
    out = jax.block_until_ready(out)

    ref = reference_forward(token_ids, lut, conv_ws, conv_bs, lin_w, lin_b, filtsz,
                            param_dtype=jnp.bfloat16)
    assert out.shape == (B, nc)
    # Same bf16 quantization in both paths; remaining diffs are fp32
    # accumulation-order noise, so a tight-ish tolerance still holds.
    assert jnp.allclose(out, ref, rtol=2e-3, atol=2e-3), (out, ref)

    # TODO(synk): Dropout(p=0.5) only affects training; the kernel implements eval-mode (identity).
    print("KERNEL_OK")
</pallas_src>

<mosaic_0001>
module attributes {stable_mosaic.version = 11 : i64} {
  func.func @kernel(%arg0: i32, %arg1: memref<8x13x32xbf16, #tpu.memory_space<vmem>>, %arg2: memref<160x128xbf16, #tpu.memory_space<vmem>>, %arg3: memref<1x128xf32, #tpu.memory_space<vmem>>, %arg4: memref<9x128xf32, #tpu.memory_space<vmem>>, %arg5: memref<128x128xbf16, #tpu.memory_space<vmem>>, %arg6: memref<1x128xf32, #tpu.memory_space<vmem>>, %arg7: memref<8x128xf32, #tpu.memory_space<vmem>>) attributes {dimension_semantics = [#tpu.dimension_semantics<parallel>], iteration_bounds = array<i64: 2>, scalar_prefetch = 0 : i64, scratch_operands = 0 : i64, tpu.core_type = #tpu.core_type<tc>, window_params = [{transform_indices = @transform_0, window_bounds = array<i64: 8, 13, 32>}, {pipeline_mode = #tpu.pipeline_mode<synchronous>, transform_indices = @transform_1, window_bounds = array<i64: 160, 128>}, {pipeline_mode = #tpu.pipeline_mode<synchronous>, transform_indices = @transform_2, window_bounds = array<i64: 1, 128>}, {pipeline_mode = #tpu.pipeline_mode<synchronous>, transform_indices = @transform_3, window_bounds = array<i64: 9, 128>}, {pipeline_mode = #tpu.pipeline_mode<synchronous>, transform_indices = @transform_4, window_bounds = array<i64: 128, 128>}, {pipeline_mode = #tpu.pipeline_mode<synchronous>, transform_indices = @transform_5, window_bounds = array<i64: 1, 128>}, {transform_indices = @transform_6, window_bounds = array<i64: 8, 128>}]} {
    %c0 = arith.constant 0 : index
    %c0_0 = arith.constant 0 : index
    %c0_1 = arith.constant 0 : index
    %0 = vector.load %arg1[%c0, %c0_0, %c0_1] : memref<8x13x32xbf16, #tpu.memory_space<vmem>>, vector<8x13x32xbf16>
    %1 = vector.extract_strided_slice %0 {offsets = [0, 0, 0], sizes = [8, 9, 32], strides = [1, 1, 1]} : vector<8x13x32xbf16> to vector<8x9x32xbf16>
    %2 = vector.extract_strided_slice %0 {offsets = [0, 1, 0], sizes = [8, 9, 32], strides = [1, 1, 1]} : vector<8x13x32xbf16> to vector<8x9x32xbf16>
    %3 = vector.extract_strided_slice %0 {offsets = [0, 2, 0], sizes = [8, 9, 32], strides = [1, 1, 1]} : vector<8x13x32xbf16> to vector<8x9x32xbf16>
    %4 = vector.extract_strided_slice %0 {offsets = [0, 3, 0], sizes = [8, 9, 32], strides = [1, 1, 1]} : vector<8x13x32xbf16> to vector<8x9x32xbf16>
    %5 = vector.extract_strided_slice %0 {offsets = [0, 4, 0], sizes = [8, 9, 32], strides = [1, 1, 1]} : vector<8x13x32xbf16> to vector<8x9x32xbf16>
    %6 = tpu.concatenate %1, %2, %3, %4, %5 in 2 : vector<8x9x32xbf16>, vector<8x9x32xbf16>, vector<8x9x32xbf16>, vector<8x9x32xbf16>, vector<8x9x32xbf16> -> vector<8x9x160xbf16>
    %c0_2 = arith.constant 0 : index
    %c0_3 = arith.constant 0 : index
    %7 = vector.load %arg2[%c0_2, %c0_3] : memref<160x128xbf16, #tpu.memory_space<vmem>>, vector<160x128xbf16>
    %cst = arith.constant dense<0.000000e+00> : vector<8x9x128xf32>
    %8 = tpu.matmul %6, %7, %cst {dimension_numbers = #tpu.dot_dimension_numbers<[2], [0], [0, 1], [1], [0, 0, 0, 1, 1, 1], [], []>} : vector<8x9x160xbf16>, vector<160x128xbf16>, vector<8x9x128xf32> -> vector<8x9x128xf32>
    %c0_4 = arith.constant 0 : index
    %c0_5 = arith.constant 0 : index
    %9 = vector.load %arg4[%c0_4, %c0_5] : memref<9x128xf32, #tpu.memory_space<vmem>>, vector<9x128xf32>
    %10 = vector.shape_cast %9 : vector<9x128xf32> to vector<1x9x128xf32>
    %11 = vector.broadcast %10 : vector<1x9x128xf32> to vector<8x9x128xf32>
    %12 = arith.addf %8, %11 : vector<8x9x128xf32>
    %cst_6 = arith.constant dense<0xFF800000> : vector<8x128xf32>
    %13 = vector.multi_reduction <maximumf>, %12, %cst_6 [1] : vector<8x9x128xf32> to vector<8x128xf32>
    %c0_7 = arith.constant 0 : index
    %c0_8 = arith.constant 0 : index
    %14 = vector.load %arg3[%c0_7, %c0_8] : memref<1x128xf32, #tpu.memory_space<vmem>>, vector<1x128xf32>
    %15 = vector.broadcast %14 : vector<1x128xf32> to vector<8x128xf32>
    %16 = arith.addf %13, %15 : vector<8x128xf32>
    %cst_9 = arith.constant 0.000000e+00 : f32
    %17 = vector.broadcast %cst_9 : f32 to vector<8x128xf32>
    %18 = arith.maximumf %16, %17 : vector<8x128xf32>
    %19 = arith.truncf %18 : vector<8x128xf32> to vector<8x128xbf16>
    %c0_10 = arith.constant 0 : index
    %c0_11 = arith.constant 0 : index
    %20 = vector.load %arg5[%c0_10, %c0_11] : memref<128x128xbf16, #tpu.memory_space<vmem>>, vector<128x128xbf16>
    %cst_12 = arith.constant dense<0.000000e+00> : vector<8x128xf32>
    %21 = tpu.matmul %19, %20, %cst_12 {dimension_numbers = #tpu.dot_dimension_numbers<[1], [0], [0], [1], [0, 0, 1, 1], [], []>} : vector<8x128xbf16>, vector<128x128xbf16>, vector<8x128xf32> -> vector<8x128xf32>
    %c0_13 = arith.constant 0 : index
    %c0_14 = arith.constant 0 : index
    %22 = vector.load %arg6[%c0_13, %c0_14] : memref<1x128xf32, #tpu.memory_space<vmem>>, vector<1x128xf32>
    %23 = vector.broadcast %22 : vector<1x128xf32> to vector<8x128xf32>
    %24 = arith.addf %21, %23 : vector<8x128xf32>
    %cst_15 = arith.constant dense<0xFF800000> : vector<8xf32>
    %25 = vector.multi_reduction <maximumf>, %24, %cst_15 [1] : vector<8x128xf32> to vector<8xf32>
    %26 = vector.shape_cast %25 : vector<8xf32> to vector<8x1xf32>
    %27 = vector.broadcast %26 : vector<8x1xf32> to vector<8x128xf32>
    %28 = arith.subf %24, %27 : vector<8x128xf32>
    %29 = math.exp %28 : vector<8x128xf32>
    %cst_16 = arith.constant dense<0.000000e+00> : vector<8xf32>
    %30 = vector.multi_reduction <add>, %29, %cst_16 [1] : vector<8x128xf32> to vector<8xf32>
    %31 = vector.shape_cast %30 : vector<8xf32> to vector<8x1xf32>
    %32 = math.log %31 : vector<8x1xf32>
    %33 = vector.broadcast %32 : vector<8x1xf32> to vector<8x128xf32>
    %34 = arith.subf %28, %33 : vector<8x128xf32>
    %c0_17 = arith.constant 0 : index
    %c0_18 = arith.constant 0 : index
    %35 = vector.load %arg7[%c0_17, %c0_18] : memref<8x128xf32, #tpu.memory_space<vmem>>, vector<8x128xf32>
    tpu.vector_store %arg7[%c0_17, %c0_18], %34 {strides = array<i32>} : memref<8x128xf32, #tpu.memory_space<vmem>>, vector<8x128xf32>,
    return
  }
  func.func @transform_0(%arg0: i32) -> (i32, i32, i32) {
    %c0_i32 = arith.constant 0 : i32
    %c0_i32_0 = arith.constant 0 : i32
    %c0_i32_1 = arith.constant 0 : i32
    return %arg0, %c0_i32, %c0_i32_0 : i32, i32, i32
  }
  func.func @transform_1(%arg0: i32) -> (i32, i32) {
    %c0_i32 = arith.constant 0 : i32
    %c0_i32_0 = arith.constant 0 : i32
    %c0_i32_1 = arith.constant 0 : i32
    return %c0_i32, %c0_i32_0 : i32, i32
  }
  func.func @transform_2(%arg0: i32) -> (i32, i32) {
    %c0_i32 = arith.constant 0 : i32
    %c0_i32_0 = arith.constant 0 : i32
    %c0_i32_1 = arith.constant 0 : i32
    return %c0_i32, %c0_i32_0 : i32, i32
  }
  func.func @transform_3(%arg0: i32) -> (i32, i32) {
    %c0_i32 = arith.constant 0 : i32
    %c0_i32_0 = arith.constant 0 : i32
    %c0_i32_1 = arith.constant 0 : i32
    return %c0_i32, %c0_i32_0 : i32, i32
  }
  func.func @transform_4(%arg0: i32) -> (i32, i32) {
    %c0_i32 = arith.constant 0 : i32
    %c0_i32_0 = arith.constant 0 : i32
    %c0_i32_1 = arith.constant 0 : i32
    return %c0_i32, %c0_i32_0 : i32, i32
  }
  func.func @transform_5(%arg0: i32) -> (i32, i32) {
    %c0_i32 = arith.constant 0 : i32
    %c0_i32_0 = arith.constant 0 : i32
    %c0_i32_1 = arith.constant 0 : i32
    return %c0_i32, %c0_i32_0 : i32, i32
  }
  func.func @transform_6(%arg0: i32) -> (i32, i32) {
    %c0_i32 = arith.constant 0 : i32
    %c0_i32_0 = arith.constant 0 : i32
    return %arg0, %c0_i32 : i32, i32
  }
}

</mosaic_0001>

<llo_original>
// kernel: tpu_custom_call.1
$region0: #{tpu_custom_call.1}
  #allocation0 [shape = 'u32[]', space=smem, size = 0x4, offset = 0x4, fixed_abs, tag = 'smem constant byte address 0x4 - core index']
  #allocation1 [shape = 'u32[144,128]{1,0:T(1,128)}', space=vmem, size = 0x12000, scoped, tag = 'internal scratch']
  %s0 = inlined_call_operand.vmem [shape: bf16[16,13,32], index: 0, kind: input, shape index: {}]
  %s1 = inlined_call_operand.vmem [shape: bf16[160,128], index: 1, kind: input, shape index: {}]
  %s2 = inlined_call_operand.vmem [shape: f32[1,128], index: 2, kind: input, shape index: {}]
  %s3 = inlined_call_operand.vmem [shape: f32[9,128], index: 3, kind: input, shape index: {}]
  %s4 = inlined_call_operand.vmem [shape: bf16[128,128], index: 4, kind: input, shape index: {}]
  %s5 = inlined_call_operand.vmem [shape: f32[1,128], index: 5, kind: input, shape index: {}]
  %s6 = inlined_call_operand.hbm [shape: f32[16,128], index: 6, kind: output, shape index: {}]
  %s7 = sld [smem:[#allocation0]]
  $region57: #{tpu_custom_call.1} parent=0
    _
  %s9 = ssub.s32 1, %s7
  %s10 = scalar_select 0, %s9, %s7
  $region1: #{tpu_custom_call.1} parent=0
    #allocation2 [shape = 'u8[8192]{0}', space=vmem, size = 0x2000, scoped, tag = 'output window, operand 0']
    #allocation3 [shape = 's32[2]{0}', space=sflag, size = 0x8, scoped, tag = 'scoped memory for tpu_custom_call.1']
    %11 = vsyncpa [#allocation3], 0
    %s12 = scalar_lea.sflag [#allocation3], 1
    %13 = vsyncpa %s12, 0
    loop: start=0, step=1, limit=4
    $region2: #{tpu_custom_call.1} parent=1 // loop_pre_header
      _
    $region3: #{tpu_custom_call.1} parent=1 // loop_header
      %s15 = sphi 0, %s19
      %p16 = scmp.ge.s32.totalorder %s15, 4
      %s25 = sphi 0, %s27
      %s28 = sphi 0, %s25
      %s29 = sphi 0, %s28
      %s45 = sphi 0, %s29
      %s49 = sphi 0, %s49
      %s51 = sphi 0, %s49
      %s52 = sphi 0, %s51
      %s66 = sphi 0, %s52
      %s70 = sphi 0, %s70
      %s72 = sphi 0, %s70
      %s73 = sphi 0, %s72
      %s87 = sphi 0, %s73
      %s91 = sphi 0, %s91
      %s93 = sphi 0, %s91
      %s94 = sphi 0, %s93
      %s108 = sphi 0, %s94
      %s112 = sphi 0, %s112
      %s114 = sphi 0, %s112
      %s115 = sphi 0, %s114
      %s129 = sphi 0, %s115
      %s133 = sphi 0, %s133
      %s135 = sphi 0, %s133
      %s136 = sphi 0, %s135
      %s150 = sphi 0, %s136
      %s156 = sphi 0, %s158
      %s159 = sphi 0, %s156
      %s160 = sphi 0, %s159
      %s176 = sphi 0, %s160
    $region4: #{tpu_custom_call.1} parent=1 // loop_header_branch
      %18 = sbr.rel (%p16) target = $region8
    $region5: #{tpu_custom_call.1} parent=1 // loop_body
      %s20 = ssub.s32 %s15, 1
      %s21 = ssub.s32 %s15, 2
      %s22 = sadd.s32 %s15, 1
      %s23 = ssub.s32 %s15, %s22
      %p24 = scmp.eq.s32.totalorder %s23, 0
      %s26 = sadd.s32 %s25, 1
      %s27 = scalar_select %p24, %s25, %s26
      %p30 = pneg %p24
      %p31 = scmp.eq.s32.totalorder %s15, 1
      %p32 = por %p30, %p31
      %p33 = scmp.ne.s32.totalorder %s25, %s28
      %p34 = scmp.eq.s32.totalorder %s15, 0
      %p35 = por %p33, %p34
      %p36 = scmp.ne.s32.totalorder %s25, %s28
      %p37 = scmp.eq.s32.totalorder %s20, 1
      %p38 = por %p36, %p37
      %p39 = scmp.ne.s32.totalorder %s28, %s29
      %p40 = scmp.eq.s32.totalorder %s20, 0
      %p41 = por %p39, %p40
      %p42 = scmp.ne.s32.totalorder %s28, %s29
      %p43 = scmp.eq.s32.totalorder %s21, 1
      %p44 = por %p42, %p43
      %p46 = scmp.ne.s32.totalorder %s29, %s45
      %p47 = scmp.eq.s32.totalorder %s21, 0
      %p48 = por %p46, %p47
      %s50 = sadd.s32 %s49, 1
      %p53 = scmp.eq.s32.totalorder %s15, 1
      %p54 = scmp.ne.s32.totalorder %s49, %s51
      %p55 = scmp.eq.s32.totalorder %s15, 0
      %p56 = por %p54, %p55
      %p57 = scmp.ne.s32.totalorder %s49, %s51
      %p58 = scmp.eq.s32.totalorder %s20, 1
      %p59 = por %p57, %p58
      %p60 = scmp.ne.s32.totalorder %s51, %s52
      %p61 = scmp.eq.s32.totalorder %s20, 0
      %p62 = por %p60, %p61
      %p63 = scmp.ne.s32.totalorder %s51, %s52
      %p64 = scmp.eq.s32.totalorder %s21, 1
      %p65 = por %p63, %p64
      %p67 = scmp.ne.s32.totalorder %s52, %s66
      %p68 = scmp.eq.s32.totalorder %s21, 0
      %p69 = por %p67, %p68
      %s71 = sadd.s32 %s70, 1
      %p74 = scmp.eq.s32.totalorder %s15, 1
      %p75 = scmp.ne.s32.totalorder %s70, %s72
      %p76 = scmp.eq.s32.totalorder %s15, 0
      %p77 = por %p75, %p76
      %p78 = scmp.ne.s32.totalorder %s70, %s72
      %p79 = scmp.eq.s32.totalorder %s20, 1
      %p80 = por %p78, %p79
      %p81 = scmp.ne.s32.totalorder %s72, %s73
      %p82 = scmp.eq.s32.totalorder %s20, 0
      %p83 = por %p81, %p82
      %p84 = scmp.ne.s32.totalorder %s72, %s73
      %p85 = scmp.eq.s32.totalorder %s21, 1
      %p86 = por %p84, %p85
      %p88 = scmp.ne.s32.totalorder %s73, %s87
      %p89 = scmp.eq.s32.totalorder %s21, 0
      %p90 = por %p88, %p89
      %s92 = sadd.s32 %s91, 1
      %p95 = scmp.eq.s32.totalorder %s15, 1
      %p96 = scmp.ne.s32.totalorder %s91, %s93
      %p97 = scmp.eq.s32.totalorder %s15, 0
      %p98 = por %p96, %p97
      %p99 = scmp.ne.s32.totalorder %s91, %s93
      %p100 = scmp.eq.s32.totalorder %s20, 1
      %p101 = por %p99, %p100
      %p102 = scmp.ne.s32.totalorder %s93, %s94
      %p103 = scmp.eq.s32.totalorder %s20, 0
      %p104 = por %p102, %p103
      %p105 = scmp.ne.s32.totalorder %s93, %s94
      %p106 = scmp.eq.s32.totalorder %s21, 1
      %p107 = por %p105, %p106
      %p109 = scmp.ne.s32.totalorder %s94, %s108
      %p110 = scmp.eq.s32.totalorder %s21, 0
      %p111 = por %p109, %p110
      %s113 = sadd.s32 %s112, 1
      %p116 = scmp.eq.s32.totalorder %s15, 1
      %p117 = scmp.ne.s32.totalorder %s112, %s114
      %p118 = scmp.eq.s32.totalorder %s15, 0
      %p119 = por %p117, %p118
      %p120 = scmp.ne.s32.totalorder %s112, %s114
      %p121 = scmp.eq.s32.totalorder %s20, 1
      %p122 = por %p120, %p121
      %p123 = scmp.ne.s32.totalorder %s114, %s115
      %p124 = scmp.eq.s32.totalorder %s20, 0
      %p125 = por %p123, %p124
      %p126 = scmp.ne.s32.totalorder %s114, %s115
      %p127 = scmp.eq.s32.totalorder %s21, 1
      %p128 = por %p126, %p127
      %p130 = scmp.ne.s32.totalorder %s115, %s129
      %p131 = scmp.eq.s32.totalorder %s21, 0
      %p132 = por %p130, %p131
      %s134 = sadd.s32 %s133, 1
      %p137 = scmp.eq.s32.totalorder %s15, 1
      %p138 = scmp.ne.s32.totalorder %s133, %s135
      %p139 = scmp.eq.s32.totalorder %s15, 0
      %p140 = por %p138, %p139
      %p141 = scmp.ne.s32.totalorder %s133, %s135
      %p142 = scmp.eq.s32.totalorder %s20, 1
      %p143 = por %p141, %p142
      %p144 = scmp.ne.s32.totalorder %s135, %s136
      %p145 = scmp.eq.s32.totalorder %s20, 0
      %p146 = por %p144, %p145
      %p147 = scmp.ne.s32.totalorder %s135, %s136
      %p148 = scmp.eq.s32.totalorder %s21, 1
      %p149 = por %p147, %p148
      %p151 = scmp.ne.s32.totalorder %s136, %s150
      %p152 = scmp.eq.s32.totalorder %s21, 0
      %p153 = por %p151, %p152
      %s154 = ssub.s32 %s15, %s22
      %p155 = scmp.eq.s32.totalorder %s154, 0
      %s157 = sadd.s32 %s156, 1
      %s158 = scalar_select %p155, %s156, %s157
      %p161 = pneg %p155
      %p162 = scmp.eq.s32.totalorder %s15, 1
      %p163 = por %p161, %p162
      %p164 = scmp.ne.s32.totalorder %s156, %s159
      %p165 = scmp.eq.s32.totalorder %s15, 0
      %p166 = por %p164, %p165
      %p167 = scmp.ne.s32.totalorder %s156, %s159
      %p168 = scmp.eq.s32.totalorder %s20, 1
      %p169 = por %p167, %p168
      %p170 = scmp.ne.s32.totalorder %s159, %s160
      %p171 = scmp.eq.s32.totalorder %s20, 0
      %p172 = por %p170, %p171
      %p173 = scmp.ne.s32.totalorder %s159, %s160
      %p174 = scmp.eq.s32.totalorder %s21, 1
      %p175 = por %p173, %p174
      %p177 = scmp.ne.s32.totalorder %s160, %s176
      %p178 = scmp.eq.s32.totalorder %s21, 0
      %p179 = por %p177, %p178
      %p180 = scmp.le.s32.totalorder 1, %s15
      %p181 = scmp.lt.s32.totalorder %s15, 3
      %p182 = pnand %p180, %p181
      %p183 = pneg %p182
      // Predicated region
      $region9: #{tpu_custom_call.1} parent=5 // pred_check
        _
      $region10: #{tpu_custom_call.1} parent=5 // pred_check_branch
        %185 = sbr.rel (%p182) target = $region12
      $region11: #{tpu_custom_call.1} parent=5 // pred_region
        %s186 = ssub.s32 %s15, 1
        // Predicated region
        $region13: #{tpu_custom_call.1} parent=11 // pred_check
          %p187 = pneg %p62
        $region14: #{tpu_custom_call.1} parent=11 // pred_check_branch
          %189 = sbr.rel (%p187) target = $region16
        $region15: #{tpu_custom_call.1} parent=11 // pred_region
          _
        $region16: #{tpu_custom_call.1} parent=11 // pred_fallthru
          _
        // Predicated region
        $region17: #{tpu_custom_call.1} parent=11 // pred_check
          %p190 = pneg %p83
        $region18: #{tpu_custom_call.1} parent=11 // pred_check_branch
          %192 = sbr.rel (%p190) target = $region20
        $region19: #{tpu_custom_call.1} parent=11 // pred_region
          _
        $region20: #{tpu_custom_call.1} parent=11 // pred_fallthru
          _
        // Predicated region
        $region21: #{tpu_custom_call.1} parent=11 // pred_check
          %p193 = pneg %p104
        $region22: #{tpu_custom_call.1} parent=11 // pred_check_branch
          %195 = sbr.rel (%p193) target = $region24
        $region23: #{tpu_custom_call.1} parent=11 // pred_region
          _
        $region24: #{tpu_custom_call.1} parent=11 // pred_fallthru
          _
        // Predicated region
        $region25: #{tpu_custom_call.1} parent=11 // pred_check
          %p196 = pneg %p125
        $region26: #{tpu_custom_call.1} parent=11 // pred_check_branch
          %198 = sbr.rel (%p196) target = $region28
        $region27: #{tpu_custom_call.1} parent=11 // pred_region
          _
        $region28: #{tpu_custom_call.1} parent=11 // pred_fallthru
          _
        // Predicated region
        $region29: #{tpu_custom_call.1} parent=11 // pred_check
          %p199 = pneg %p146
        $region30: #{tpu_custom_call.1} parent=11 // pred_check_branch
          %201 = sbr.rel (%p199) target = $region32
        $region31: #{tpu_custom_call.1} parent=11 // pred_region
          _
        $region32: #{tpu_custom_call.1} parent=11 // pred_fallthru
          _
      $region12: #{tpu_custom_call.1} parent=5 // pred_fallthru
        _
      %p202 = scmp.lt.s32.totalorder %s15, 2
      // Predicated region
      $region33: #{tpu_custom_call.1} parent=5 // pred_check
        %p203 = pneg %p202
      $region34: #{tpu_custom_call.1} parent=5 // pred_check_branch
        %205 = sbr.rel (%p203) target = $region36
      $region35: #{tpu_custom_call.1} parent=5 // pred_region
        // Predicated region
        $region37: #{tpu_custom_call.1} parent=35 // pred_check
          %p206 = pneg %p35
        $region38: #{tpu_custom_call.1} parent=35 // pred_check_branch
          %208 = sbr.rel (%p206) target = $region40
        $region39: #{tpu_custom_call.1} parent=35 // pred_region
          %s209 = smul.u32 8, %s15
          %p210 = scmp.lt.s32.totalorder %s209, 15
          %s211 = scalar_select %p210, %s209, 15
          %s212 = smul.addr %s211, 2
          %s213 = smul.addr %s212, 4
          %s214 = scalar_lea.vmem %s0, %s213
          %s215 = smul.u32 8, %s15
        $region40: #{tpu_custom_call.1} parent=35 // pred_fallthru
          _
      $region36: #{tpu_custom_call.1} parent=5 // pred_fallthru
        _
      %p216 = scmp.le.s32.totalorder 1, %s15
      %p217 = scmp.lt.s32.totalorder %s15, 3
      %p218 = pnand %p216, %p217
      %p219 = pneg %p218
      // Predicated region
      $region41: #{tpu_custom_call.1} parent=5 // pred_check
        _
      $region42: #{tpu_custom_call.1} parent=5 // pred_check_branch
        %221 = sbr.rel (%p218) target = $region44
      $region43: #{tpu_custom_call.1} parent=5 // pred_region
        %s222 = ssub.s32 %s15, 1
        %s223 = smul.u32 8, %s20
        %p224 = scmp.lt.s32.totalorder %s223, 15
        %s225 = scalar_select %p224, %s223, 15
        %s226 = smul.addr %s225, 2
        %s227 = smul.addr %s226, 4
        %s228 = scalar_lea.vmem %s0, %s227
        %p229 = pneg %p41
        %p230 = pneg %p38
        %p231 = pneg %p62
        %p232 = pneg %p59
        %p233 = pneg %p83
        %p234 = pneg %p80
        %p235 = pneg %p104
        %p236 = pneg %p101
        %p237 = pneg %p125
        %p238 = pneg %p122
        %p239 = pneg %p146
        %p240 = pneg %p143
        %p241 = pneg %p172
        %p242 = pneg %p169
        %s243 = sand.u32 %s159, 1
        %s244 = scalar_lea.sflag [#allocation3], %s243
        %s245 = sand.u32 %s159, 1
        %s246 = smul.addr %s245, 8
        %s247 = scalar_lea.vmem [#allocation2], %s246
        %s248 = smul.u32 8, %s20
        %p249 = scmp.lt.s32.totalorder %s248, 15
        %s250 = scalar_select %p249, %s248, 15
        %s251 = smul.addr %s250, 2
        %s252 = smul.addr %s251, 4
        %s253 = scalar_lea.vmem %s0, %s252
        %s254 = smul.u32 8, %s20
        %v256 = vld [vmem:[%s253] sm:$0xf]
        %v257 = vld [vmem:[%s253 + $0x4] sm:$0x7]
        %v258 = vld [vmem:[%s253 + $0x8] sm:$0xf]
        %v259 = vld [vmem:[%s253 + $0xc] sm:$0x7]
        %v260 = vld [vmem:[%s253 + $0x10] sm:$0xf]
        %v261 = vld [vmem:[%s253 + $0x14] sm:$0x7]
        %v262 = vld [vmem:[%s253 + $0x18] sm:$0xf]
        %v263 = vld [vmem:[%s253 + $0x1c] sm:$0x7]
        %v264 = vld [vmem:[%s253 + $0x20] sm:$0xf]
        %v265 = vld [vmem:[%s253 + $0x24] sm:$0x7]
        %v266 = vld [vmem:[%s253 + $0x28] sm:$0xf]
        %v267 = vld [vmem:[%s253 + $0x2c] sm:$0x7]
        %v268 = vld [vmem:[%s253 + $0x30] sm:$0xf]
        %v269 = vld [vmem:[%s253 + $0x34] sm:$0x7]
        %v270 = vld [vmem:[%s253 + $0x38] sm:$0xf]
        %v271 = vld [vmem:[%s253 + $0x3c] sm:$0x7]
        %v288 = vunpack.c.l.b16 %v256
        %v289 = vunpack.c.l.b16 %v257
        %v290 = vunpack.c.l.b16 %v258
        %v291 = vunpack.c.l.b16 %v259
        %v292 = vunpack.c.l.b16 %v260
        %v293 = vunpack.c.l.b16 %v261
        %v294 = vunpack.c.l.b16 %v262
        %v295 = vunpack.c.l.b16 %v263
        %v296 = vunpack.c.l.b16 %v264
        %v297 = vunpack.c.l.b16 %v265
        %v298 = vunpack.c.l.b16 %v266
        %v299 = vunpack.c.l.b16 %v267
        %v300 = vunpack.c.l.b16 %v268
        %v301 = vunpack.c.l.b16 %v269
        %v302 = vunpack.c.l.b16 %v270
        %v303 = vunpack.c.l.b16 %v271
        %v304 = vpack.c.b16 %v289, %v288
        %v305 = vpack.c.b16 %v291, %v290
        %v306 = vpack.c.b16 %v293, %v292
        %v307 = vpack.c.b16 %v295, %v294
        %v308 = vpack.c.b16 %v297, %v296
        %v309 = vpack.c.b16 %v299, %v298
        %v310 = vpack.c.b16 %v301, %v300
        %v311 = vpack.c.b16 %v303, %v302
        %v313 = vshrl.u32 %v304, 16
        %v315 = vshll.u32 %v304, 16
        %v317 = vrot.slane %v315, 1
        %v318 = vor.u32 %v313, %v317
        %v320 = vshrl.u32 %v305, 16
        %v322 = vshll.u32 %v305, 16
        %v324 = vrot.slane %v322, 1
        %v325 = vor.u32 %v320, %v324
        %v327 = vshrl.u32 %v306, 16
        %v329 = vshll.u32 %v306, 16
        %v331 = vrot.slane %v329, 1
        %v332 = vor.u32 %v327, %v331
        %v334 = vshrl.u32 %v307, 16
        %v336 = vshll.u32 %v307, 16
        %v338 = vrot.slane %v336, 1
        %v339 = vor.u32 %v334, %v338
        %v341 = vshrl.u32 %v308, 16
        %v343 = vshll.u32 %v308, 16
        %v345 = vrot.slane %v343, 1
        %v346 = vor.u32 %v341, %v345
        %v348 = vshrl.u32 %v309, 16
        %v350 = vshll.u32 %v309, 16
        %v352 = vrot.slane %v350, 1
        %v353 = vor.u32 %v348, %v352
        %v355 = vshrl.u32 %v310, 16
        %v357 = vshll.u32 %v310, 16
        %v359 = vrot.slane %v357, 1
        %v360 = vor.u32 %v355, %v359
        %v362 = vshrl.u32 %v311, 16
        %v364 = vshll.u32 %v311, 16
        %v366 = vrot.slane %v364, 1
        %v367 = vor.u32 %v362, %v366
        %368 = vrot.lane.b32.xlu0 %v318, 32
        %v369 = vpop.permute.xlu0 %368
        %370 = vrot.lane.b32.xlu0 %v325, 32
        %v371 = vpop.permute.xlu0 %370
        %372 = vrot.lane.b32.xlu0 %v332, 32
        %v373 = vpop.permute.xlu0 %372
        %374 = vrot.lane.b32.xlu0 %v339, 32
        %v375 = vpop.permute.xlu0 %374
        %376 = vrot.lane.b32.xlu0 %v346, 32
        %v377 = vpop.permute.xlu0 %376
        %378 = vrot.lane.b32.xlu0 %v353, 32
        %v379 = vpop.permute.xlu0 %378
        %380 = vrot.lane.b32.xlu0 %v360, 32
        %v381 = vpop.permute.xlu0 %380
        %382 = vrot.lane.b32.xlu0 %v367, 32
        %v383 = vpop.permute.xlu0 %382
        %v384 = vrot.slane %v304, 1
        %v385 = vrot.slane %v305, 1
        %v386 = vrot.slane %v306, 1
        %v387 = vrot.slane %v307, 1
        %v388 = vrot.slane %v308, 1
        %v389 = vrot.slane %v309, 1
        %v390 = vrot.slane %v310, 1
        %v391 = vrot.slane %v311, 1
        %392 = vrot.lane.b32.xlu0 %v384, 64
        %v393 = vpop.permute.xlu0 %392
        %394 = vrot.lane.b32.xlu0 %v385, 64
        %v395 = vpop.permute.xlu0 %394
        %396 = vrot.lane.b32.xlu0 %v386, 64
        %v397 = vpop.permute.xlu0 %396
        %398 = vrot.lane.b32.xlu0 %v387, 64
        %v399 = vpop.permute.xlu0 %398
        %400 = vrot.lane.b32.xlu0 %v388, 64
        %v401 = vpop.permute.xlu0 %400
        %402 = vrot.lane.b32.xlu0 %v389, 64
        %v403 = vpop.permute.xlu0 %402
        %404 = vrot.lane.b32.xlu0 %v390, 64
        %v405 = vpop.permute.xlu0 %404
        %406 = vrot.lane.b32.xlu0 %v391, 64
        %v407 = vpop.permute.xlu0 %406
        %v408 = vrot.slane %v313, 1
        %v409 = vrot.slane %v315, 2
        %v410 = vor.u32 %v408, %v409
        %v411 = vrot.slane %v320, 1
        %v412 = vrot.slane %v322, 2
        %v413 = vor.u32 %v411, %v412
        %v414 = vrot.slane %v327, 1
        %v415 = vrot.slane %v329, 2
        %v416 = vor.u32 %v414, %v415
        %v417 = vrot.slane %v334, 1
        %v418 = vrot.slane %v336, 2
        %v419 = vor.u32 %v417, %v418
        %v420 = vrot.slane %v341, 1
        %v421 = vrot.slane %v343, 2
        %v422 = vor.u32 %v420, %v421
        %v423 = vrot.slane %v348, 1
        %v424 = vrot.slane %v350, 2
        %v425 = vor.u32 %v423, %v424
        %v426 = vrot.slane %v355, 1
        %v427 = vrot.slane %v357, 2
        %v428 = vor.u32 %v426, %v427
        %v429 = vrot.slane %v362, 1
        %v430 = vrot.slane %v364, 2
        %v431 = vor.u32 %v429, %v430
        %432 = vrot.lane.b32.xlu0 %v410, 96
        %v433 = vpop.permute.xlu0 %432
        %434 = vrot.lane.b32.xlu0 %v413, 96
        %v435 = vpop.permute.xlu0 %434
        %436 = vrot.lane.b32.xlu0 %v416, 96
        %v437 = vpop.permute.xlu0 %436
        %438 = vrot.lane.b32.xlu0 %v419, 96
        %v439 = vpop.permute.xlu0 %438
        %440 = vrot.lane.b32.xlu0 %v422, 96
        %v441 = vpop.permute.xlu0 %440
        %442 = vrot.lane.b32.xlu0 %v425, 96
        %v443 = vpop.permute.xlu0 %442
        %444 = vrot.lane.b32.xlu0 %v428, 96
        %v445 = vpop.permute.xlu0 %444
        %446 = vrot.lane.b32.xlu0 %v431, 96
        %v447 = vpop.permute.xlu0 %446
        %v448 = vrot.slane %v304, 2
        %v449 = vrot.slane %v305, 2
        %v450 = vrot.slane %v306, 2
        %v451 = vrot.slane %v307, 2
        %v452 = vrot.slane %v308, 2
        %v453 = vrot.slane %v309, 2
        %v454 = vrot.slane %v310, 2
        %v455 = vrot.slane %v311, 2
        %vm456 = vcmask 261120
        %v458 = vsel %vm456, %v304, %v369
        %v460 = vsel %vm456, %v305, %v371
        %v462 = vsel %vm456, %v306, %v373
        %v464 = vsel %vm456, %v307, %v375
        %v466 = vsel %vm456, %v308, %v377
        %v468 = vsel %vm456, %v309, %v379
        %v470 = vsel %vm456, %v310, %v381
        %v472 = vsel %vm456, %v311, %v383
        %vm473 = vcmask 523264
        %v475 = vsel %vm473, %v458, %v393
        %v477 = vsel %vm473, %v460, %v395
        %v479 = vsel %vm473, %v462, %v397
        %v481 = vsel %vm473, %v464, %v399
        %v483 = vsel %vm473, %v466, %v401
        %v485 = vsel %vm473, %v468, %v403
        %v487 = vsel %vm473, %v470, %v405
        %v489 = vsel %vm473, %v472, %v407
        %vm490 = vcmask 785408
        %v492 = vsel %vm490, %v475, %v433
        %v494 = vsel %vm490, %v477, %v435
        %v496 = vsel %vm490, %v479, %v437
        %v498 = vsel %vm490, %v481, %v439
        %v500 = vsel %vm490, %v483, %v441
        %v502 = vsel %vm490, %v485, %v443
        %v504 = vsel %vm490, %v487, %v445
        %v506 = vsel %vm490, %v489, %v447
        %v507 = vld [vmem:[%s1] sm:$0xf]
        %v508 = vld [vmem:[%s1 + $0x4] sm:$0xf]
        %v509 = vld [vmem:[%s1 + $0x8] sm:$0xf]
        %v510 = vld [vmem:[%s1 + $0xc] sm:$0xf]
        %v511 = vld [vmem:[%s1 + $0x10] sm:$0xf]
        %v512 = vld [vmem:[%s1 + $0x14] sm:$0xf]
        %v513 = vld [vmem:[%s1 + $0x18] sm:$0xf]
        %v514 = vld [vmem:[%s1 + $0x1c] sm:$0xf]
        %v515 = vld [vmem:[%s1 + $0x20] sm:$0xf]
        %v516 = vld [vmem:[%s1 + $0x24] sm:$0xf]
        %v517 = vld [vmem:[%s1 + $0x28] sm:$0xf]
        %v518 = vld [vmem:[%s1 + $0x2c] sm:$0xf]
        %v519 = vld [vmem:[%s1 + $0x30] sm:$0xf]
        %v520 = vld [vmem:[%s1 + $0x34] sm:$0xf]
        %v521 = vld [vmem:[%s1 + $0x38] sm:$0xf]
        %v522 = vld [vmem:[%s1 + $0x3c] sm:$0xf]
        %v523 = vld [vmem:[%s1 + $0x40] sm:$0xf]
        %v524 = vld [vmem:[%s1 + $0x44] sm:$0xf]
        %v525 = vld [vmem:[%s1 + $0x48] sm:$0xf]
        %v526 = vld [vmem:[%s1 + $0x4c] sm:$0xf]
        %v527 = vld [vmem:[%s3] sm:$0xff]
        %v528 = vld [vmem:[%s3 + $0x8] sm:$0x1]
        %v537 = vcombine.low %v492, %v448
        %v538 = vcombine.high %v492, %v448
        %v540 = vunpack.c.l.s4 1966171168
        %v541 = vunpack.c.0.s8 %v540
        %v542 = vlaneseq
        %v543 = vshrl.u32 %v542, 7
        %v544 = vsub.s32 %v541, %v543
        %v545 = vrot.slane %v537, %v544
        %v547 = vunpack.c.l.s4 1966171168
        %v548 = vunpack.c.0.s8 %v547
        %v549 = vlaneseq
        %v550 = vshrl.u32 %v549, 7
        %v551 = vsub.s32 %v548, %v550
        %v552 = vrot.slane %v538, %v551
        %v553 = vcombine.high %v545, %v545
        %v555 = vunpack.c.l.s4 1966171168
        %v556 = vunpack.c.0.s8 %v555
        %v557 = vlaneseq
        %v558 = vshrl.u32 %v557, 7
        %v559 = vsub.s32 %v556, %v558
        %v560 = vrot.slane %v545, %v559
        %v562 = vunpack.c.l.s4 1966171168
        %v563 = vunpack.c.0.s8 %v562
        %v564 = vlaneseq
        %v565 = vshrl.u32 %v564, 7
        %v566 = vsub.s32 %v563, %v565
        %v567 = vrot.slane %v552, %v566
        %v569 = vunpack.c.l.s4 1966171168
        %v570 = vunpack.c.0.s8 %v569
        %v571 = vlaneseq
        %v572 = vshrl.u32 %v571, 7
        %v573 = vsub.s32 %v570, %v572
        %v574 = vrot.slane %v553, %v573
        %v575 = vcombine.high %v560, %v560
        %v576 = vcombine.high %v574, %v574
        %v577 = vcombine.low %v494, %v449
        %v578 = vcombine.high %v494, %v449
        %v580 = vunpack.c.l.s4 1966171168
        %v581 = vunpack.c.0.s8 %v580
        %v582 = vlaneseq
        %v583 = vshrl.u32 %v582, 7
        %v584 = vsub.s32 %v581, %v583
        %v585 = vrot.slane %v577, %v584
        %v587 = vunpack.c.l.s4 1966171168
        %v588 = vunpack.c.0.s8 %v587
        %v589 = vlaneseq
        %v590 = vshrl.u32 %v589, 7
        %v591 = vsub.s32 %v588, %v590
        %v592 = vrot.slane %v578, %v591
        %v593 = vcombine.high %v585, %v585
        %v595 = vunpack.c.l.s4 1966171168
        %v596 = vunpack.c.0.s8 %v595
        %v597 = vlaneseq
        %v598 = vshrl.u32 %v597, 7
        %v599 = vsub.s32 %v596, %v598
        %v600 = vrot.slane %v585, %v599
        %v602 = vunpack.c.l.s4 1966171168
        %v603 = vunpack.c.0.s8 %v602
        %v604 = vlaneseq
        %v605 = vshrl.u32 %v604, 7
        %v606 = vsub.s32 %v603, %v605
        %v607 = vrot.slane %v592, %v606
        %v609 = vunpack.c.l.s4 1966171168
        %v610 = vunpack.c.0.s8 %v609
        %v611 = vlaneseq
        %v612 = vshrl.u32 %v611, 7
        %v613 = vsub.s32 %v610, %v612
        %v614 = vrot.slane %v593, %v613
        %v615 = vcombine.high %v600, %v600
        %v616 = vcombine.high %v614, %v614
        %v617 = vcombine.low %v496, %v450
        %v618 = vcombine.high %v496, %v450
        %v620 = vunpack.c.l.s4 1966171168
        %v621 = vunpack.c.0.s8 %v620
        %v622 = vlaneseq
        %v623 = vshrl.u32 %v622, 7
        %v624 = vsub.s32 %v621, %v623
        %v625 = vrot.slane %v617, %v624
        %v627 = vunpack.c.l.s4 1966171168
        %v628 = vunpack.c.0.s8 %v627
        %v629 = vlaneseq
        %v630 = vshrl.u32 %v629, 7
        %v631 = vsub.s32 %v628, %v630
        %v632 = vrot.slane %v618, %v631
        %v633 = vcombine.high %v625, %v625
        %v635 = vunpack.c.l.s4 1966171168
        %v636 = vunpack.c.0.s8 %v635
        %v637 = vlaneseq
        %v638 = vshrl.u32 %v637, 7
        %v639 = vsub.s32 %v636, %v638
        %v640 = vrot.slane %v625, %v639
        %v642 = vunpack.c.l.s4 1966171168
        %v643 = vunpack.c.0.s8 %v642
        %v644 = vlaneseq
        %v645 = vshrl.u32 %v644, 7
        %v646 = vsub.s32 %v643, %v645
        %v647 = vrot.slane %v632, %v646
        %v649 = vunpack.c.l.s4 1966171168
        %v650 = vunpack.c.0.s8 %v649
        %v651 = vlaneseq
        %v652 = vshrl.u32 %v651, 7
        %v653 = vsub.s32 %v650, %v652
        %v654 = vrot.slane %v633, %v653
        %v655 = vcombine.high %v640, %v640
        %v656 = vcombine.high %v654, %v654
        %v657 = vcombine.low %v498, %v451
        %v658 = vcombine.high %v498, %v451
        %v660 = vunpack.c.l.s4 1966171168
        %v661 = vunpack.c.0.s8 %v660
        %v662 = vlaneseq
        %v663 = vshrl.u32 %v662, 7
        %v664 = vsub.s32 %v661, %v663
        %v665 = vrot.slane %v657, %v664
        %v667 = vunpack.c.l.s4 1966171168
        %v668 = vunpack.c.0.s8 %v667
        %v669 = vlaneseq
        %v670 = vshrl.u32 %v669, 7
        %v671 = vsub.s32 %v668, %v670
        %v672 = vrot.slane %v658, %v671
        %v673 = vcombine.high %v665, %v665
        %v675 = vunpack.c.l.s4 1966171168
        %v676 = vunpack.c.0.s8 %v675
        %v677 = vlaneseq
        %v678 = vshrl.u32 %v677, 7
        %v679 = vsub.s32 %v676, %v678
        %v680 = vrot.slane %v665, %v679
        %v682 = vunpack.c.l.s4 1966171168
        %v683 = vunpack.c.0.s8 %v682
        %v684 = vlaneseq
        %v685 = vshrl.u32 %v684, 7
        %v686 = vsub.s32 %v683, %v685
        %v687 = vrot.slane %v672, %v686
        %v689 = vunpack.c.l.s4 1966171168
        %v690 = vunpack.c.0.s8 %v689
        %v691 = vlaneseq
        %v692 = vshrl.u32 %v691, 7
        %v693 = vsub.s32 %v690, %v692
        %v694 = vrot.slane %v673, %v693
        %v695 = vcombine.high %v680, %v680
        %v696 = vcombine.high %v694, %v694
        %v697 = vcombine.low %v500, %v452
        %v698 = vcombine.high %v500, %v452
        %v700 = vunpack.c.l.s4 1966171168
        %v701 = vunpack.c.0.s8 %v700
        %v702 = vlaneseq
        %v703 = vshrl.u32 %v702, 7
        %v704 = vsub.s32 %v701, %v703
        %v705 = vrot.slane %v697, %v704
        %v707 = vunpack.c.l.s4 1966171168
        %v708 = vunpack.c.0.s8 %v707
        %v709 = vlaneseq
        %v710 = vshrl.u32 %v709, 7
        %v711 = vsub.s32 %v708, %v710
        %v712 = vrot.slane %v698, %v711
        %v713 = vcombine.high %v705, %v705
        %v715 = vunpack.c.l.s4 1966171168
        %v716 = vunpack.c.0.s8 %v715
        %v717 = vlaneseq
        %v718 = vshrl.u32 %v717, 7
        %v719 = vsub.s32 %v716, %v718
        %v720 = vrot.slane %v705, %v719
        %v722 = vunpack.c.l.s4 1966171168
        %v723 = vunpack.c.0.s8 %v722
        %v724 = vlaneseq
        %v725 = vshrl.u32 %v724, 7
        %v726 = vsub.s32 %v723, %v725
        %v727 = vrot.slane %v712, %v726
        %v729 = vunpack.c.l.s4 1966171168
        %v730 = vunpack.c.0.s8 %v729
        %v731 = vlaneseq
        %v732 = vshrl.u32 %v731, 7
        %v733 = vsub.s32 %v730, %v732
        %v734 = vrot.slane %v713, %v733
        %v735 = vcombine.high %v720, %v720
        %v736 = vcombine.high %v734, %v734
        %v737 = vcombine.low %v502, %v453
        %v738 = vcombine.high %v502, %v453
        %v740 = vunpack.c.l.s4 1966171168
        %v741 = vunpack.c.0.s8 %v740
        %v742 = vlaneseq
        %v743 = vshrl.u32 %v742, 7
        %v744 = vsub.s32 %v741, %v743
        %v745 = vrot.slane %v737, %v744
        %v747 = vunpack.c.l.s4 1966171168
        %v748 = vunpack.c.0.s8 %v747
        %v749 = vlaneseq
        %v750 = vshrl.u32 %v749, 7
        %v751 = vsub.s32 %v748, %v750
        %v752 = vrot.slane %v738, %v751
        %v753 = vcombine.high %v745, %v745
        %v755 = vunpack.c.l.s4 1966171168
        %v756 = vunpack.c.0.s8 %v755
        %v757 = vlaneseq
        %v758 = vshrl.u32 %v757, 7
        %v759 = vsub.s32 %v756, %v758
        %v760 = vrot.slane %v745, %v759
        %v762 = vunpack.c.l.s4 1966171168
        %v763 = vunpack.c.0.s8 %v762
        %v764 = vlaneseq
        %v765 = vshrl.u32 %v764, 7
        %v766 = vsub.s32 %v763, %v765
        %v767 = vrot.slane %v752, %v766
        %v769 = vunpack.c.l.s4 1966171168
        %v770 = vunpack.c.0.s8 %v769
        %v771 = vlaneseq
        %v772 = vshrl.u32 %v771, 7
        %v773 = vsub.s32 %v770, %v772
        %v774 = vrot.slane %v753, %v773
        %v775 = vcombine.high %v760, %v760
        %v776 = vcombine.high %v774, %v774
        %v777 = vcombine.low %v504, %v454
        %v778 = vcombine.high %v504, %v454
        %v780 = vunpack.c.l.s4 1966171168
        %v781 = vunpack.c.0.s8 %v780
        %v782 = vlaneseq
        %v783 = vshrl.u32 %v782, 7
        %v784 = vsub.s32 %v781, %v783
        %v785 = vrot.slane %v777, %v784
        %v787 = vunpack.c.l.s4 1966171168
        %v788 = vunpack.c.0.s8 %v787
        %v789 = vlaneseq
        %v790 = vshrl.u32 %v789, 7
        %v791 = vsub.s32 %v788, %v790
        %v792 = vrot.slane %v778, %v791
        %v793 = vcombine.high %v785, %v785
        %v795 = vunpack.c.l.s4 1966171168
        %v796 = vunpack.c.0.s8 %v795
        %v797 = vlaneseq
        %v798 = vshrl.u32 %v797, 7
        %v799 = vsub.s32 %v796, %v798
        %v800 = vrot.slane %v785, %v799
        %v802 = vunpack.c.l.s4 1966171168
        %v803 = vunpack.c.0.s8 %v802
        %v804 = vlaneseq
        %v805 = vshrl.u32 %v804, 7
        %v806 = vsub.s32 %v803, %v805
        %v807 = vrot.slane %v792, %v806
        %v809 = vunpack.c.l.s4 1966171168
        %v810 = vunpack.c.0.s8 %v809
        %v811 = vlaneseq
        %v812 = vshrl.u32 %v811, 7
        %v813 = vsub.s32 %v810, %v812
        %v814 = vrot.slane %v793, %v813
        %v815 = vcombine.high %v800, %v800
        %v816 = vcombine.high %v814, %v814
        %v817 = vcombine.low %v506, %v455
        %v818 = vcombine.high %v506, %v455
        %v820 = vunpack.c.l.s4 1966171168
        %v821 = vunpack.c.0.s8 %v820
        %v822 = vlaneseq
        %v823 = vshrl.u32 %v822, 7
        %v824 = vsub.s32 %v821, %v823
        %v825 = vrot.slane %v817, %v824
        %v827 = vunpack.c.l.s4 1966171168
        %v828 = vunpack.c.0.s8 %v827
        %v829 = vlaneseq
        %v830 = vshrl.u32 %v829, 7
        %v831 = vsub.s32 %v828, %v830
        %v832 = vrot.slane %v818, %v831
        %v833 = vcombine.high %v825, %v825
        %v835 = vunpack.c.l.s4 1966171168
        %v836 = vunpack.c.0.s8 %v835
        %v837 = vlaneseq
        %v838 = vshrl.u32 %v837, 7
        %v839 = vsub.s32 %v836, %v838
        %v840 = vrot.slane %v825, %v839
        %v842 = vunpack.c.l.s4 1966171168
        %v843 = vunpack.c.0.s8 %v842
        %v844 = vlaneseq
        %v845 = vshrl.u32 %v844, 7
        %v846 = vsub.s32 %v843, %v845
        %v847 = vrot.slane %v832, %v846
        %v849 = vunpack.c.l.s4 1966171168
        %v850 = vunpack.c.0.s8 %v849
        %v851 = vlaneseq
        %v852 = vshrl.u32 %v851, 7
        %v853 = vsub.s32 %v850, %v852
        %v854 = vrot.slane %v833, %v853
        %v855 = vcombine.high %v840, %v840
        %v856 = vcombine.high %v854, %v854
        %v857 = vunpack.i.l.s16 %v560
        %v858 = vunpack.i.h.s16 %v560
        %v859 = vunpack.i.l.s16 %v574
        %v860 = vunpack.i.h.s16 %v574
        %v861 = vunpack.i.l.s16 %v575
        %v862 = vunpack.i.h.s16 %v575
        %v863 = vunpack.i.l.s16 %v576
        %v864 = vunpack.i.h.s16 %v576
        %v865 = vunpack.i.l.s16 %v567
        %v866 = vunpack.i.l.s16 %v600
        %v867 = vunpack.i.h.s16 %v600
        %v868 = vunpack.i.l.s16 %v614
        %v869 = vunpack.i.h.s16 %v614
        %v870 = vunpack.i.l.s16 %v615
        %v871 = vunpack.i.h.s16 %v615
        %v872 = vunpack.i.l.s16 %v616
        %v873 = vunpack.i.h.s16 %v616
        %v874 = vunpack.i.l.s16 %v607
        %v875 = vunpack.i.l.s16 %v640
        %v876 = vunpack.i.h.s16 %v640
        %v877 = vunpack.i.l.s16 %v654
        %v878 = vunpack.i.h.s16 %v654
        %v879 = vunpack.i.l.s16 %v655
        %v880 = vunpack.i.h.s16 %v655
        %v881 = vunpack.i.l.s16 %v656
        %v882 = vunpack.i.h.s16 %v656
        %v883 = vunpack.i.l.s16 %v647
        %v884 = vunpack.i.l.s16 %v680
        %v885 = vunpack.i.h.s16 %v680
        %v886 = vunpack.i.l.s16 %v694
        %v887 = vunpack.i.h.s16 %v694
        %v888 = vunpack.i.l.s16 %v695
        %v889 = vunpack.i.h.s16 %v695
        %v890 = vunpack.i.l.s16 %v696
        %v891 = vunpack.i.h.s16 %v696
        %v892 = vunpack.i.l.s16 %v687
        %v893 = vunpack.i.l.s16 %v720
        %v894 = vunpack.i.h.s16 %v720
        %v895 = vunpack.i.l.s16 %v734
        %v896 = vunpack.i.h.s16 %v734
        %v897 = vunpack.i.l.s16 %v735
        %v898 = vunpack.i.h.s16 %v735
        %v899 = vunpack.i.l.s16 %v736
        %v900 = vunpack.i.h.s16 %v736
        %v901 = vunpack.i.l.s16 %v727
        %v902 = vunpack.i.l.s16 %v760
        %v903 = vunpack.i.h.s16 %v760
        %v904 = vunpack.i.l.s16 %v774
        %v905 = vunpack.i.h.s16 %v774
        %v906 = vunpack.i.l.s16 %v775
        %v907 = vunpack.i.h.s16 %v775
        %v908 = vunpack.i.l.s16 %v776
        %v909 = vunpack.i.h.s16 %v776
        %v910 = vunpack.i.l.s16 %v767
        %v911 = vunpack.i.l.s16 %v800
        %v912 = vunpack.i.h.s16 %v800
        %v913 = vunpack.i.l.s16 %v814
        %v914 = vunpack.i.h.s16 %v814
        %v915 = vunpack.i.l.s16 %v815
        %v916 = vunpack.i.h.s16 %v815
        %v917 = vunpack.i.l.s16 %v816
        %v918 = vunpack.i.h.s16 %v816
        %v919 = vunpack.i.l.s16 %v807
        %v920 = vunpack.i.l.s16 %v840
        %v921 = vunpack.i.h.s16 %v840
        %v922 = vunpack.i.l.s16 %v854
        %v923 = vunpack.i.h.s16 %v854
        %v924 = vunpack.i.l.s16 %v855
        %v925 = vunpack.i.h.s16 %v855
        %v926 = vunpack.i.l.s16 %v856
        %v927 = vunpack.i.h.s16 %v856
        %v928 = vunpack.i.l.s16 %v847
        %v931 = vcombine.high %v527, %v527
        %v933 = vunpack.c.l.s4 1966171168
        %v934 = vunpack.c.0.s8 %v933
        %v935 = vlaneseq
        %v936 = vshrl.u32 %v935, 7
        %v937 = vsub.s32 %v934, %v936
        %v938 = vrot.slane %v527, %v937
        %v940 = vunpack.c.l.s4 1966171168
        %v941 = vunpack.c.0.s8 %v940
        %v942 = vlaneseq
        %v943 = vshrl.u32 %v942, 7
        %v944 = vsub.s32 %v941, %v943
        %v945 = vrot.slane %v931, %v944
        %v946 = vcombine.high %v938, %v938
        %v947 = vcombine.high %v945, %v945
        %v949 = vunpack.c.l.s4 1966171168
        %v950 = vunpack.c.0.s8 %v949
        %v951 = vlaneseq
        %v952 = vshrl.u32 %v951, 7
        %v953 = vsub.s32 %v950, %v952
        %v954 = vrot.slane %v938, %v953
        %v956 = vunpack.c.l.s4 1966171168
        %v957 = vunpack.c.0.s8 %v956
        %v958 = vlaneseq
        %v959 = vshrl.u32 %v958, 7
        %v960 = vsub.s32 %v957, %v959
        %v961 = vrot.slane %v945, %v960
        %v963 = vunpack.c.l.s4 1966171168
        %v964 = vunpack.c.0.s8 %v963
        %v965 = vlaneseq
        %v966 = vshrl.u32 %v965, 7
        %v967 = vsub.s32 %v964, %v966
        %v968 = vrot.slane %v946, %v967
        %v970 = vunpack.c.l.s4 1966171168
        %v971 = vunpack.c.0.s8 %v970
        %v972 = vlaneseq
        %v973 = vshrl.u32 %v972, 7
        %v974 = vsub.s32 %v971, %v973
        %v975 = vrot.slane %v947, %v974
        %v976 = vcombine.high %v954, %v954
        %v977 = vcombine.high %v961, %v961
        %v978 = vcombine.high %v968, %v968
        %v979 = vcombine.high %v975, %v975
        %v981 = vunpack.c.l.s4 1966171168
        %v982 = vunpack.c.0.s8 %v981
        %v983 = vlaneseq
        %v984 = vshrl.u32 %v983, 7
        %v985 = vsub.s32 %v982, %v984
        %v986 = vrot.slane %v528, %v985
        %v988 = vunpack.c.l.s4 1966171168
        %v989 = vunpack.c.0.s8 %v988
        %v990 = vlaneseq
        %v991 = vshrl.u32 %v990, 7
        %v992 = vsub.s32 %v989, %v991
        %v993 = vrot.slane %v986, %v992
        %v994 = vpack.i.b16 %v858, %v857
        %v995 = vpack.i.b16 %v860, %v859
        %v996 = vpack.i.b16 %v862, %v861
        %v997 = vpack.i.b16 %v864, %v863
        %v998 = vpack.i.b16 %v866, %v865
        %v999 = vpack.i.b16 %v868, %v867
        %v1000 = vpack.i.b16 %v870, %v869
        %v1001 = vpack.i.b16 %v872, %v871
        %v1002 = vpack.i.b16 %v874, %v873
        %v1003 = vpack.i.b16 %v876, %v875
        %v1004 = vpack.i.b16 %v878, %v877
        %v1005 = vpack.i.b16 %v880, %v879
        %v1006 = vpack.i.b16 %v882, %v881
        %v1007 = vpack.i.b16 %v884, %v883
        %v1008 = vpack.i.b16 %v886, %v885
        %v1009 = vpack.i.b16 %v888, %v887
        %v1010 = vpack.i.b16 %v890, %v889
        %v1011 = vpack.i.b16 %v892, %v891
        %v1012 = vpack.i.b16 %v894, %v893
        %v1013 = vpack.i.b16 %v896, %v895
        %v1014 = vpack.i.b16 %v898, %v897
        %v1015 = vpack.i.b16 %v900, %v899
        %v1016 = vpack.i.b16 %v902, %v901
        %v1017 = vpack.i.b16 %v904, %v903
        %v1018 = vpack.i.b16 %v906, %v905
        %v1019 = vpack.i.b16 %v908, %v907
        %v1020 = vpack.i.b16 %v910, %v909
        %v1021 = vpack.i.b16 %v912, %v911
        %v1022 = vpack.i.b16 %v914, %v913
        %v1023 = vpack.i.b16 %v916, %v915
        %v1024 = vpack.i.b16 %v918, %v917
        %v1025 = vpack.i.b16 %v920, %v919
        %v1026 = vpack.i.b16 %v922, %v921
        %v1027 = vpack.i.b16 %v924, %v923
        %v1028 = vpack.i.b16 %v926, %v925
        %v1029 = vpack.i.b16 %v928, %v927
        %v1030 = vcombine.low %v994, %v995
        %v1031 = vcombine.low %v996, %v997
        %v1032 = vcombine.low %v998, %v999
        %v1033 = vcombine.low %v1000, %v1001
        %v1035 = vunpack.c.l.s4 1966171168
        %v1036 = vunpack.c.0.s8 %v1035
        %v1037 = vlaneseq
        %v1038 = vshrl.u32 %v1037, 7
        %v1039 = vsub.s32 %v1036, %v1038
        %v1040 = vrot.slane %v1030, %v1039
        %v1042 = vunpack.c.l.s4 1966171168
        %v1043 = vunpack.c.0.s8 %v1042
        %v1044 = vlaneseq
        %v1045 = vshrl.u32 %v1044, 7
        %v1046 = vsub.s32 %v1043, %v1045
        %v1047 = vrot.slane %v1031, %v1046
        %v1049 = vunpack.c.l.s4 1966171168
        %v1050 = vunpack.c.0.s8 %v1049
        %v1051 = vlaneseq
        %v1052 = vshrl.u32 %v1051, 7
        %v1053 = vsub.s32 %v1050, %v1052
        %v1054 = vrot.slane %v1032, %v1053
        %v1056 = vunpack.c.l.s4 1966171168
        %v1057 = vunpack.c.0.s8 %v1056
        %v1058 = vlaneseq
        %v1059 = vshrl.u32 %v1058, 7
        %v1060 = vsub.s32 %v1057, %v1059
        %v1061 = vrot.slane %v1033, %v1060
        %v1062 = vcombine.low %v1040, %v1047
        %v1063 = vcombine.high %v1040, %v1047
        %v1064 = vcombine.low %v1054, %v1061
        %v1065 = vcombine.high %v1054, %v1061
        %v1067 = vunpack.c.l.s4 1966171168
        %v1068 = vunpack.c.0.s8 %v1067
        %v1069 = vlaneseq
        %v1070 = vshrl.u32 %v1069, 7
        %v1071 = vsub.s32 %v1068, %v1070
        %v1072 = vrot.slane %v1062, %v1071
        %v1074 = vunpack.c.l.s4 1966171168
        %v1075 = vunpack.c.0.s8 %v1074
        %v1076 = vlaneseq
        %v1077 = vshrl.u32 %v1076, 7
        %v1078 = vsub.s32 %v1075, %v1077
        %v1079 = vrot.slane %v1063, %v1078
        %v1081 = vunpack.c.l.s4 1966171168
        %v1082 = vunpack.c.0.s8 %v1081
        %v1083 = vlaneseq
        %v1084 = vshrl.u32 %v1083, 7
        %v1085 = vsub.s32 %v1082, %v1084
        %v1086 = vrot.slane %v1064, %v1085
        %v1088 = vunpack.c.l.s4 1966171168
        %v1089 = vunpack.c.0.s8 %v1088
        %v1090 = vlaneseq
        %v1091 = vshrl.u32 %v1090, 7
        %v1092 = vsub.s32 %v1089, %v1091
        %v1093 = vrot.slane %v1065, %v1092
        %v1094 = vcombine.low %v1072, %v1086
        %v1095 = vcombine.low %v1079, %v1093
        %v1096 = vcombine.low %v1002, %v1003
        %v1097 = vcombine.low %v1004, %v1005
        %v1098 = vcombine.low %v1006, %v1007
        %v1099 = vcombine.low %v1008, %v1009
        %v1101 = vunpack.c.l.s4 1966171168
        %v1102 = vunpack.c.0.s8 %v1101
        %v1103 = vlaneseq
        %v1104 = vshrl.u32 %v1103, 7
        %v1105 = vsub.s32 %v1102, %v1104
        %v1106 = vrot.slane %v1096, %v1105
        %v1108 = vunpack.c.l.s4 1966171168
        %v1109 = vunpack.c.0.s8 %v1108
        %v1110 = vlaneseq
        %v1111 = vshrl.u32 %v1110, 7
        %v1112 = vsub.s32 %v1109, %v1111
        %v1113 = vrot.slane %v1097, %v1112
        %v1115 = vunpack.c.l.s4 1966171168
        %v1116 = vunpack.c.0.s8 %v1115
        %v1117 = vlaneseq
        %v1118 = vshrl.u32 %v1117, 7
        %v1119 = vsub.s32 %v1116, %v1118
        %v1120 = vrot.slane %v1098, %v1119
        %v1122 = vunpack.c.l.s4 1966171168
        %v1123 = vunpack.c.0.s8 %v1122
        %v1124 = vlaneseq
        %v1125 = vshrl.u32 %v1124, 7
        %v1126 = vsub.s32 %v1123, %v1125
        %v1127 = vrot.slane %v1099, %v1126
        %v1128 = vcombine.low %v1106, %v1113
        %v1129 = vcombine.high %v1106, %v1113
        %v1130 = vcombine.low %v1120, %v1127
        %v1131 = vcombine.high %v1120, %v1127
        %v1133 = vunpack.c.l.s4 1966171168
        %v1134 = vunpack.c.0.s8 %v1133
        %v1135 = vlaneseq
        %v1136 = vshrl.u32 %v1135, 7
        %v1137 = vsub.s32 %v1134, %v1136
        %v1138 = vrot.slane %v1128, %v1137
        %v1140 = vunpack.c.l.s4 1966171168
        %v1141 = vunpack.c.0.s8 %v1140
        %v1142 = vlaneseq
        %v1143 = vshrl.u32 %v1142, 7
        %v1144 = vsub.s32 %v1141, %v1143
        %v1145 = vrot.slane %v1129, %v1144
        %v1147 = vunpack.c.l.s4 1966171168
        %v1148 = vunpack.c.0.s8 %v1147
        %v1149 = vlaneseq
        %v1150 = vshrl.u32 %v1149, 7
        %v1151 = vsub.s32 %v1148, %v1150
        %v1152 = vrot.slane %v1130, %v1151
        %v1154 = vunpack.c.l.s4 1966171168
        %v1155 = vunpack.c.0.s8 %v1154
        %v1156 = vlaneseq
        %v1157 = vshrl.u32 %v1156, 7
        %v1158 = vsub.s32 %v1155, %v1157
        %v1159 = vrot.slane %v1131, %v1158
        %v1160 = vcombine.low %v1138, %v1152
        %v1161 = vcombine.low %v1145, %v1159
        %v1162 = vcombine.low %v1010, %v1011
        %v1163 = vcombine.low %v1012, %v1013
        %v1164 = vcombine.low %v1014, %v1015
        %v1165 = vcombine.low %v1016, %v1017
        %v1167 = vunpack.c.l.s4 1966171168
        %v1168 = vunpack.c.0.s8 %v1167
        %v1169 = vlaneseq
        %v1170 = vshrl.u32 %v1169, 7
        %v1171 = vsub.s32 %v1168, %v1170
        %v1172 = vrot.slane %v1162, %v1171
        %v1174 = vunpack.c.l.s4 1966171168
        %v1175 = vunpack.c.0.s8 %v1174
        %v1176 = vlaneseq
        %v1177 = vshrl.u32 %v1176, 7
        %v1178 = vsub.s32 %v1175, %v1177
        %v1179 = vrot.slane %v1163, %v1178
        %v1181 = vunpack.c.l.s4 1966171168
        %v1182 = vunpack.c.0.s8 %v1181
        %v1183 = vlaneseq
        %v1184 = vshrl.u32 %v1183, 7
        %v1185 = vsub.s32 %v1182, %v1184
        %v1186 = vrot.slane %v1164, %v1185
        %v1188 = vunpack.c.l.s4 1966171168
        %v1189 = vunpack.c.0.s8 %v1188
        %v1190 = vlaneseq
        %v1191 = vshrl.u32 %v1190, 7
        %v1192 = vsub.s32 %v1189, %v1191
        %v1193 = vrot.slane %v1165, %v1192
        %v1194 = vcombine.low %v1172, %v1179
        %v1195 = vcombine.high %v1172, %v1179
        %v1196 = vcombine.low %v1186, %v1193
        %v1197 = vcombine.high %v1186, %v1193
        %v1199 = vunpack.c.l.s4 1966171168
        %v1200 = vunpack.c.0.s8 %v1199
        %v1201 = vlaneseq
        %v1202 = vshrl.u32 %v1201, 7
        %v1203 = vsub.s32 %v1200, %v1202
        %v1204 = vrot.slane %v1194, %v1203
        %v1206 = vunpack.c.l.s4 1966171168
        %v1207 = vunpack.c.0.s8 %v1206
        %v1208 = vlaneseq
        %v1209 = vshrl.u32 %v1208, 7
        %v1210 = vsub.s32 %v1207, %v1209
        %v1211 = vrot.slane %v1195, %v1210
        %v1213 = vunpack.c.l.s4 1966171168
        %v1214 = vunpack.c.0.s8 %v1213
        %v1215 = vlaneseq
        %v1216 = vshrl.u32 %v1215, 7
        %v1217 = vsub.s32 %v1214, %v1216
        %v1218 = vrot.slane %v1196, %v1217
        %v1220 = vunpack.c.l.s4 1966171168
        %v1221 = vunpack.c.0.s8 %v1220
        %v1222 = vlaneseq
        %v1223 = vshrl.u32 %v1222, 7
        %v1224 = vsub.s32 %v1221, %v1223
        %v1225 = vrot.slane %v1197, %v1224
        %v1226 = vcombine.low %v1204, %v1218
        %v1227 = vcombine.low %v1211, %v1225
        %v1228 = vcombine.low %v1018, %v1019
        %v1229 = vcombine.low %v1020, %v1021
        %v1230 = vcombine.low %v1022, %v1023
        %v1231 = vcombine.low %v1024, %v1025
        %v1233 = vunpack.c.l.s4 1966171168
        %v1234 = vunpack.c.0.s8 %v1233
        %v1235 = vlaneseq
        %v1236 = vshrl.u32 %v1235, 7
        %v1237 = vsub.s32 %v1234, %v1236
        %v1238 = vrot.slane %v1228, %v1237
        %v1240 = vunpack.c.l.s4 1966171168
        %v1241 = vunpack.c.0.s8 %v1240
        %v1242 = vlaneseq
        %v1243 = vshrl.u32 %v1242, 7
        %v1244 = vsub.s32 %v1241, %v1243
        %v1245 = vrot.slane %v1229, %v1244
        %v1247 = vunpack.c.l.s4 1966171168
        %v1248 = vunpack.c.0.s8 %v1247
        %v1249 = vlaneseq
        %v1250 = vshrl.u32 %v1249, 7
        %v1251 = vsub.s32 %v1248, %v1250
        %v1252 = vrot.slane %v1230, %v1251
        %v1254 = vunpack.c.l.s4 1966171168
        %v1255 = vunpack.c.0.s8 %v1254
        %v1256 = vlaneseq
        %v1257 = vshrl.u32 %v1256, 7
        %v1258 = vsub.s32 %v1255, %v1257
        %v1259 = vrot.slane %v1231, %v1258
        %v1260 = vcombine.low %v1238, %v1245
        %v1261 = vcombine.high %v1238, %v1245
        %v1262 = vcombine.low %v1252, %v1259
        %v1263 = vcombine.high %v1252, %v1259
        %v1265 = vunpack.c.l.s4 1966171168
        %v1266 = vunpack.c.0.s8 %v1265
        %v1267 = vlaneseq
        %v1268 = vshrl.u32 %v1267, 7
        %v1269 = vsub.s32 %v1266, %v1268
        %v1270 = vrot.slane %v1260, %v1269
        %v1272 = vunpack.c.l.s4 1966171168
        %v1273 = vunpack.c.0.s8 %v1272
        %v1274 = vlaneseq
        %v1275 = vshrl.u32 %v1274, 7
        %v1276 = vsub.s32 %v1273, %v1275
        %v1277 = vrot.slane %v1261, %v1276
        %v1279 = vunpack.c.l.s4 1966171168
        %v1280 = vunpack.c.0.s8 %v1279
        %v1281 = vlaneseq
        %v1282 = vshrl.u32 %v1281, 7
        %v1283 = vsub.s32 %v1280, %v1282
        %v1284 = vrot.slane %v1262, %v1283
        %v1286 = vunpack.c.l.s4 1966171168
        %v1287 = vunpack.c.0.s8 %v1286
        %v1288 = vlaneseq
        %v1289 = vshrl.u32 %v1288, 7
        %v1290 = vsub.s32 %v1287, %v1289
        %v1291 = vrot.slane %v1263, %v1290
        %v1292 = vcombine.low %v1270, %v1284
        %v1293 = vcombine.low %v1277, %v1291
        %v1294 = vcombine.low %v1026, %v1027
        %v1295 = vcombine.low %v1028, %v1029
        %v1297 = vunpack.c.l.s4 1966171168
        %v1298 = vunpack.c.0.s8 %v1297
        %v1299 = vlaneseq
        %v1300 = vshrl.u32 %v1299, 7
        %v1301 = vsub.s32 %v1298, %v1300
        %v1302 = vrot.slane %v1294, %v1301
        %v1304 = vunpack.c.l.s4 1966171168
        %v1305 = vunpack.c.0.s8 %v1304
        %v1306 = vlaneseq
        %v1307 = vshrl.u32 %v1306, 7
        %v1308 = vsub.s32 %v1305, %v1307
        %v1309 = vrot.slane %v1295, %v1308
        %v1310 = vcombine.low %v1302, %v1309
        %v1311 = vcombine.high %v1302, %v1309
        %v1313 = vunpack.c.l.s4 1966171168
        %v1314 = vunpack.c.0.s8 %v1313
        %v1315 = vlaneseq
        %v1316 = vshrl.u32 %v1315, 7
        %v1317 = vsub.s32 %v1314, %v1316
        %v1318 = vrot.slane %v1310, %v1317
        %v1320 = vunpack.c.l.s4 1966171168
        %v1321 = vunpack.c.0.s8 %v1320
        %v1322 = vlaneseq
        %v1323 = vshrl.u32 %v1322, 7
        %v1324 = vsub.s32 %v1321, %v1323
        %v1325 = vrot.slane %v1311, %v1324
        %v1351 = vunpack.c.l.b16 %v507
        %v1352 = vunpack.c.l.b16 %v508
        %v1353 = vunpack.c.l.b16 %v509
        %v1354 = vunpack.c.l.b16 %v510
        %v1355 = vunpack.c.l.b16 %v511
        %v1356 = vunpack.c.l.b16 %v512
        %v1357 = vunpack.c.l.b16 %v513
        %v1358 = vunpack.c.l.b16 %v514
        %v1359 = vunpack.c.l.b16 %v515
        %v1360 = vunpack.c.l.b16 %v516
        %v1361 = vunpack.c.l.b16 %v517
        %v1362 = vunpack.c.l.b16 %v518
        %v1363 = vunpack.c.l.b16 %v519
        %v1364 = vunpack.c.l.b16 %v520
        %v1365 = vunpack.c.l.b16 %v521
        %v1366 = vunpack.c.l.b16 %v522
        %v1367 = vunpack.c.l.b16 %v523
        %v1368 = vunpack.c.l.b16 %v524
        %v1369 = vunpack.c.l.b16 %v525
        %v1370 = vunpack.c.l.b16 %v526
        %v1371 = vpack.c.b16 %v1352, %v1351
        %v1372 = vpack.c.b16 %v1354, %v1353
        %v1373 = vpack.c.b16 %v1356, %v1355
        %v1374 = vpack.c.b16 %v1358, %v1357
        %v1375 = vpack.c.b16 %v1360, %v1359
        %v1376 = vpack.c.b16 %v1362, %v1361
        %v1377 = vpack.c.b16 %v1364, %v1363
        %v1378 = vpack.c.b16 %v1366, %v1365
        %v1379 = vpack.c.b16 %v1368, %v1367
        %v1380 = vpack.c.b16 %v1370, %v1369
        %v1391 = vcombine.low %v954, %v968
        %v1392 = vcombine.low %v976, %v978
        %v1393 = vcombine.low %v961, %v975
        %v1394 = vcombine.low %v977, %v979
        %v1396 = vunpack.c.l.s4 1966171168
        %v1397 = vunpack.c.0.s8 %v1396
        %v1398 = vlaneseq
        %v1399 = vshrl.u32 %v1398, 7
        %v1400 = vsub.s32 %v1397, %v1399
        %v1401 = vrot.slane %v1391, %v1400
        %v1403 = vunpack.c.l.s4 1966171168
        %v1404 = vunpack.c.0.s8 %v1403
        %v1405 = vlaneseq
        %v1406 = vshrl.u32 %v1405, 7
        %v1407 = vsub.s32 %v1404, %v1406
        %v1408 = vrot.slane %v1392, %v1407
        %v1410 = vunpack.c.l.s4 1966171168
        %v1411 = vunpack.c.0.s8 %v1410
        %v1412 = vlaneseq
        %v1413 = vshrl.u32 %v1412, 7
        %v1414 = vsub.s32 %v1411, %v1413
        %v1415 = vrot.slane %v1393, %v1414
        %v1417 = vunpack.c.l.s4 1966171168
        %v1418 = vunpack.c.0.s8 %v1417
        %v1419 = vlaneseq
        %v1420 = vshrl.u32 %v1419, 7
        %v1421 = vsub.s32 %v1418, %v1420
        %v1422 = vrot.slane %v1394, %v1421
        %v1423 = vcombine.low %v1401, %v1408
        %v1424 = vcombine.low %v1415, %v1422
        %v1426 = vunpack.c.l.s4 1966171168
        %v1427 = vunpack.c.0.s8 %v1426
        %v1428 = vlaneseq
        %v1429 = vshrl.u32 %v1428, 7
        %v1430 = vsub.s32 %v1427, %v1429
        %v1431 = vrot.slane %v1423, %v1430
        %v1433 = vunpack.c.l.s4 1966171168
        %v1434 = vunpack.c.0.s8 %v1433
        %v1435 = vlaneseq
        %v1436 = vshrl.u32 %v1435, 7
        %v1437 = vsub.s32 %v1434, %v1436
        %v1438 = vrot.slane %v1424, %v1437
        %v1439 = vcombine.low %v1431, %v1438
        %v1440 = vcombine.low %v993, %v954
        %v1441 = vcombine.low %v968, %v976
        %v1442 = vcombine.low %v978, %v961
        %v1443 = vcombine.low %v975, %v977
        %v1445 = vunpack.c.l.s4 1966171168
        %v1446 = vunpack.c.0.s8 %v1445
        %v1447 = vlaneseq
        %v1448 = vshrl.u32 %v1447, 7
        %v1449 = vsub.s32 %v1446, %v1448
        %v1450 = vrot.slane %v1440, %v1449
        %v1452 = vunpack.c.l.s4 1966171168
        %v1453 = vunpack.c.0.s8 %v1452
        %v1454 = vlaneseq
        %v1455 = vshrl.u32 %v1454, 7
        %v1456 = vsub.s32 %v1453, %v1455
        %v1457 = vrot.slane %v1441, %v1456
        %v1459 = vunpack.c.l.s4 1966171168
        %v1460 = vunpack.c.0.s8 %v1459
        %v1461 = vlaneseq
        %v1462 = vshrl.u32 %v1461, 7
        %v1463 = vsub.s32 %v1460, %v1462
        %v1464 = vrot.slane %v1442, %v1463
        %v1466 = vunpack.c.l.s4 1966171168
        %v1467 = vunpack.c.0.s8 %v1466
        %v1468 = vlaneseq
        %v1469 = vshrl.u32 %v1468, 7
        %v1470 = vsub.s32 %v1467, %v1469
        %v1471 = vrot.slane %v1443, %v1470
        %v1472 = vcombine.low %v1450, %v1457
        %v1473 = vcombine.low %v1464, %v1471
        %v1475 = vunpack.c.l.s4 1966171168
        %v1476 = vunpack.c.0.s8 %v1475
        %v1477 = vlaneseq
        %v1478 = vshrl.u32 %v1477, 7
        %v1479 = vsub.s32 %v1476, %v1478
        %v1480 = vrot.slane %v1472, %v1479
        %v1482 = vunpack.c.l.s4 1966171168
        %v1483 = vunpack.c.0.s8 %v1482
        %v1484 = vlaneseq
        %v1485 = vshrl.u32 %v1484, 7
        %v1486 = vsub.s32 %v1483, %v1485
        %v1487 = vrot.slane %v1473, %v1486
        %v1488 = vcombine.low %v1480, %v1487
        %v1489 = vcombine.low %v979, %v993
        %v1491 = vunpack.c.l.s4 1966171168
        %v1492 = vunpack.c.0.s8 %v1491
        %v1493 = vlaneseq
        %v1494 = vshrl.u32 %v1493, 7
        %v1495 = vsub.s32 %v1492, %v1494
        %v1496 = vrot.slane %v1489, %v1495
        %v1497 = vcombine.low %v1496, %v1401
        %v1498 = vcombine.low %v1408, %v1415
        %v1500 = vunpack.c.l.s4 1966171168
        %v1501 = vunpack.c.0.s8 %v1500
        %v1502 = vlaneseq
        %v1503 = vshrl.u32 %v1502, 7
        %v1504 = vsub.s32 %v1501, %v1503
        %v1505 = vrot.slane %v1497, %v1504
        %v1507 = vunpack.c.l.s4 1966171168
        %v1508 = vunpack.c.0.s8 %v1507
        %v1509 = vlaneseq
        %v1510 = vshrl.u32 %v1509, 7
        %v1511 = vsub.s32 %v1508, %v1510
        %v1512 = vrot.slane %v1498, %v1511
        %v1513 = vcombine.low %v1505, %v1512
        %v1514 = vcombine.low %v1422, %v1450
        %v1515 = vcombine.low %v1457, %v1464
        %v1517 = vunpack.c.l.s4 1966171168
        %v1518 = vunpack.c.0.s8 %v1517
        %v1519 = vlaneseq
        %v1520 = vshrl.u32 %v1519, 7
        %v1521 = vsub.s32 %v1518, %v1520
        %v1522 = vrot.slane %v1514, %v1521
        %v1524 = vunpack.c.l.s4 1966171168
        %v1525 = vunpack.c.0.s8 %v1524
        %v1526 = vlaneseq
        %v1527 = vshrl.u32 %v1526, 7
        %v1528 = vsub.s32 %v1525, %v1527
        %v1529 = vrot.slane %v1515, %v1528
        %v1530 = vcombine.low %v1522, %v1529
        %v1531 = vcombine.low %v1471, %v1496
        %v1533 = vunpack.c.l.s4 1966171168
        %v1534 = vunpack.c.0.s8 %v1533
        %v1535 = vlaneseq
        %v1536 = vshrl.u32 %v1535, 7
        %v1537 = vsub.s32 %v1534, %v1536
        %v1538 = vrot.slane %v1531, %v1537
        %v1539 = vcombine.low %v1538, %v1431
        %v1540 = vcombine.low %v1438, %v1480
        %v1541 = vcombine.low %v1487, %v1505
        %v1542 = vcombine.low %v1512, %v1522
        %v1543 = vcombine.low %v1529, %v1538
        %v1554 = vsel %vm456, %v1095, 0
        %v1557 = vsel %vm456, %v1161, 0
        %v1560 = vsel %vm456, %v1227, 0
        %v1563 = vsel %vm456, %v1293, 0
        %v1566 = vsel %vm456, %v1325, 0
        %1568 = vmatprep.subr.bf16.mxu0 0
        %1569 = vmatpush1.bf16.msra.mxu0 %v1378
        %1570 = vmatprep.subr.bf16.mxu0 0
        %1571 = vmatpush1.bf16.msra.mxu0 %v1377
        %1572 = vmatprep.subr.bf16.mxu0 0
        %1573 = vmatpush1.bf16.msra.mxu0 %v1376
        %1574 = vmatprep.subr.bf16.mxu0 0
        %1575 = vmatpush1.bf16.msra.mxu0 %v1375
        %1576 = vmatprep.subr.bf16.mxu0 0
        %1577 = vmatpush1.bf16.msra.mxu0 %v1374
        %1578 = vmatprep.subr.bf16.mxu0 0
        %1579 = vmatpush1.bf16.msra.mxu0 %v1373
        %1580 = vmatprep.subr.bf16.mxu0 0
        %1581 = vmatpush1.bf16.msra.mxu0 %v1372
        %1582 = vmatprep.subr.bf16.mxu0 0
        %1583 = vmatpush1.bf16.msra.mxu0 %v1371
        %1584 = vmatprep.subr.bf16.mxu0 0
        %1585 = vmatpush2.bf16.msra.mxu0 0
        %1586 = vmatprep.subr.bf16.mxu0 0
        %1587 = vmatpush2.bf16.msra.mxu0 0
        %1588 = vmatprep.subr.bf16.mxu0 0
        %1589 = vmatpush2.bf16.msra.mxu0 0
        %1590 = vmatprep.subr.bf16.mxu0 0
        %1591 = vmatpush2.bf16.msra.mxu0 0
        %1592 = vmatprep.subr.bf16.mxu0 0
        %1593 = vmatpush2.bf16.msra.mxu0 0
        %1594 = vmatprep.subr.bf16.mxu0 0
        %1595 = vmatpush2.bf16.msra.mxu0 0
        %1596 = vmatprep.subr.bf16.mxu0 0
        %1597 = vmatpush2.bf16.msra.mxu0 %v1380
        %1598 = vmatprep.subr.bf16.mxu0 0
        %1599 = vmatpush2.bf16.msra.mxu0 %v1379
        %1600 = vmatprep.mubr.bf16.mxu0 %v1554
        %1601 = vmatmul.mubr.bf16.gmra.mxu0 %v1094
        %v1602 = vpop.f32.mrf.mxu0
        %v1603 = vadd.f32 %v1439, %v1602
        %v1604 = vpop.f32.mrf.mxu0
        %v1605 = vpop.f32.mrf.mxu0
        %v1606 = vadd.f32 %v1488, %v1605
        %v1607 = vpop.f32.mrf.mxu0
        %1608 = vmatprep.mubr.bf16.mxu0 %v1557
        %1609 = vmatmul.mubr.bf16.gmra.mxu0 %v1160
        %v1610 = vpop.f32.mrf.mxu0
        %v1611 = vadd.f32 %v1513, %v1610
        %v1612 = vpop.f32.mrf.mxu0
        %v1613 = vpop.f32.mrf.mxu0
        %v1614 = vadd.f32 %v1530, %v1613
        %v1615 = vpop.f32.mrf.mxu0
        %1616 = vmatprep.mubr.bf16.mxu0 %v1560
        %1617 = vmatmul.mubr.bf16.gmra.mxu0 %v1226
        %v1618 = vpop.f32.mrf.mxu0
        %v1619 = vadd.f32 %v1539, %v1618
        %v1620 = vpop.f32.mrf.mxu0
        %v1621 = vpop.f32.mrf.mxu0
        %v1622 = vadd.f32 %v1540, %v1621
        %v1623 = vpop.f32.mrf.mxu0
        %1624 = vmatprep.mubr.bf16.mxu0 %v1563
        %1625 = vmatmul.mubr.bf16.gmra.mxu0 %v1292
        %v1626 = vpop.f32.mrf.mxu0
        %v1627 = vadd.f32 %v1541, %v1626
        %v1628 = vpop.f32.mrf.mxu0
        %v1629 = vpop.f32.mrf.mxu0
        %v1630 = vadd.f32 %v1542, %v1629
        %v1631 = vpop.f32.mrf.mxu0
        %1632 = vmatprep.mubr.bf16.mxu0 %v1566
        %1633 = vmatmul.mubr.bf16.gmra.mxu0 %v1318
        %v1634 = vpop.f32.mrf.mxu0
        %v1635 = vadd.f32 %v1543, %v1634
        %v1636 = vpop.f32.mrf.mxu0
        %v1637 = vpop.f32.mrf.mxu0
        %v1638 = vpop.f32.mrf.mxu0
        %1639 = vdwg.mxu0
        %v1649 = vcombine.high %v1603, %v1603
        %v1651 = vunpack.c.l.s4 1966171168
        %v1652 = vunpack.c.0.s8 %v1651
        %v1653 = vlaneseq
        %v1654 = vshrl.u32 %v1653, 7
        %v1655 = vsub.s32 %v1652, %v1654
        %v1656 = vrot.slane %v1603, %v1655
        %v1658 = vunpack.c.l.s4 1966171168
        %v1659 = vunpack.c.0.s8 %v1658
        %v1660 = vlaneseq
        %v1661 = vshrl.u32 %v1660, 7
        %v1662 = vsub.s32 %v1659, %v1661
        %v1663 = vrot.slane %v1649, %v1662
        %v1664 = vcombine.high %v1656, %v1656
        %v1665 = vcombine.high %v1663, %v1663
        %v1667 = vunpack.c.l.s4 1966171168
        %v1668 = vunpack.c.0.s8 %v1667
        %v1669 = vlaneseq
        %v1670 = vshrl.u32 %v1669, 7
        %v1671 = vsub.s32 %v1668, %v1670
        %v1672 = vrot.slane %v1656, %v1671
        %v1674 = vunpack.c.l.s4 1966171168
        %v1675 = vunpack.c.0.s8 %v1674
        %v1676 = vlaneseq
        %v1677 = vshrl.u32 %v1676, 7
        %v1678 = vsub.s32 %v1675, %v1677
        %v1679 = vrot.slane %v1663, %v1678
        %v1681 = vunpack.c.l.s4 1966171168
        %v1682 = vunpack.c.0.s8 %v1681
        %v1683 = vlaneseq
        %v1684 = vshrl.u32 %v1683, 7
        %v1685 = vsub.s32 %v1682, %v1684
        %v1686 = vrot.slane %v1664, %v1685
        %v1688 = vunpack.c.l.s4 1966171168
        %v1689 = vunpack.c.0.s8 %v1688
        %v1690 = vlaneseq
        %v1691 = vshrl.u32 %v1690, 7
        %v1692 = vsub.s32 %v1689, %v1691
        %v1693 = vrot.slane %v1665, %v1692
        %v1694 = vcombine.high %v1672, %v1672
        %v1695 = vcombine.high %v1679, %v1679
        %v1696 = vcombine.high %v1686, %v1686
        %v1697 = vcombine.high %v1693, %v1693
        %v1698 = vcombine.high %v1606, %v1606
        %v1700 = vunpack.c.l.s4 1966171168
        %v1701 = vunpack.c.0.s8 %v1700
        %v1702 = vlaneseq
        %v1703 = vshrl.u32 %v1702, 7
        %v1704 = vsub.s32 %v1701, %v1703
        %v1705 = vrot.slane %v1606, %v1704
        %v1707 = vunpack.c.l.s4 1966171168
        %v1708 = vunpack.c.0.s8 %v1707
        %v1709 = vlaneseq
        %v1710 = vshrl.u32 %v1709, 7
        %v1711 = vsub.s32 %v1708, %v1710
        %v1712 = vrot.slane %v1698, %v1711
        %v1713 = vcombine.high %v1705, %v1705
        %v1714 = vcombine.high %v1712, %v1712
        %v1716 = vunpack.c.l.s4 1966171168
        %v1717 = vunpack.c.0.s8 %v1716
        %v1718 = vlaneseq
        %v1719 = vshrl.u32 %v1718, 7
        %v1720 = vsub.s32 %v1717, %v1719
        %v1721 = vrot.slane %v1705, %v1720
        %v1723 = vunpack.c.l.s4 1966171168
        %v1724 = vunpack.c.0.s8 %v1723
        %v1725 = vlaneseq
        %v1726 = vshrl.u32 %v1725, 7
        %v1727 = vsub.s32 %v1724, %v1726
        %v1728 = vrot.slane %v1712, %v1727
        %v1730 = vunpack.c.l.s4 1966171168
        %v1731 = vunpack.c.0.s8 %v1730
        %v1732 = vlaneseq
        %v1733 = vshrl.u32 %v1732, 7
        %v1734 = vsub.s32 %v1731, %v1733
        %v1735 = vrot.slane %v1713, %v1734
        %v1737 = vunpack.c.l.s4 1966171168
        %v1738 = vunpack.c.0.s8 %v1737
        %v1739 = vlaneseq
        %v1740 = vshrl.u32 %v1739, 7
        %v1741 = vsub.s32 %v1738, %v1740
        %v1742 = vrot.slane %v1714, %v1741
        %v1743 = vcombine.high %v1721, %v1721
        %v1744 = vcombine.high %v1728, %v1728
        %v1745 = vcombine.high %v1735, %v1735
        %v1746 = vcombine.high %v1742, %v1742
        %v1747 = vcombine.high %v1611, %v1611
        %v1749 = vunpack.c.l.s4 1966171168
        %v1750 = vunpack.c.0.s8 %v1749
        %v1751 = vlaneseq
        %v1752 = vshrl.u32 %v1751, 7
        %v1753 = vsub.s32 %v1750, %v1752
        %v1754 = vrot.slane %v1611, %v1753
        %v1756 = vunpack.c.l.s4 1966171168
        %v1757 = vunpack.c.0.s8 %v1756
        %v1758 = vlaneseq
        %v1759 = vshrl.u32 %v1758, 7
        %v1760 = vsub.s32 %v1757, %v1759
        %v1761 = vrot.slane %v1747, %v1760
        %v1762 = vcombine.high %v1754, %v1754
        %v1763 = vcombine.high %v1761, %v1761
        %v1765 = vunpack.c.l.s4 1966171168
        %v1766 = vunpack.c.0.s8 %v1765
        %v1767 = vlaneseq
        %v1768 = vshrl.u32 %v1767, 7
        %v1769 = vsub.s32 %v1766, %v1768
        %v1770 = vrot.slane %v1754, %v1769
        %v1772 = vunpack.c.l.s4 1966171168
        %v1773 = vunpack.c.0.s8 %v1772
        %v1774 = vlaneseq
        %v1775 = vshrl.u32 %v1774, 7
        %v1776 = vsub.s32 %v1773, %v1775
        %v1777 = vrot.slane %v1761, %v1776
        %v1779 = vunpack.c.l.s4 1966171168
        %v1780 = vunpack.c.0.s8 %v1779
        %v1781 = vlaneseq
        %v1782 = vshrl.u32 %v1781, 7
        %v1783 = vsub.s32 %v1780, %v1782
        %v1784 = vrot.slane %v1762, %v1783
        %v1786 = vunpack.c.l.s4 1966171168
        %v1787 = vunpack.c.0.s8 %v1786
        %v1788 = vlaneseq
        %v1789 = vshrl.u32 %v1788, 7
        %v1790 = vsub.s32 %v1787, %v1789
        %v1791 = vrot.slane %v1763, %v1790
        %v1792 = vcombine.high %v1770, %v1770
        %v1793 = vcombine.high %v1777, %v1777
        %v1794 = vcombine.high %v1784, %v1784
        %v1795 = vcombine.high %v1791, %v1791
        %v1796 = vcombine.high %v1614, %v1614
        %v1798 = vunpack.c.l.s4 1966171168
        %v1799 = vunpack.c.0.s8 %v1798
        %v1800 = vlaneseq
        %v1801 = vshrl.u32 %v1800, 7
        %v1802 = vsub.s32 %v1799, %v1801
        %v1803 = vrot.slane %v1614, %v1802
        %v1805 = vunpack.c.l.s4 1966171168
        %v1806 = vunpack.c.0.s8 %v1805
        %v1807 = vlaneseq
        %v1808 = vshrl.u32 %v1807, 7
        %v1809 = vsub.s32 %v1806, %v1808
        %v1810 = vrot.slane %v1796, %v1809
        %v1811 = vcombine.high %v1803, %v1803
        %v1812 = vcombine.high %v1810, %v1810
        %v1814 = vunpack.c.l.s4 1966171168
        %v1815 = vunpack.c.0.s8 %v1814
        %v1816 = vlaneseq
        %v1817 = vshrl.u32 %v1816, 7
        %v1818 = vsub.s32 %v1815, %v1817
        %v1819 = vrot.slane %v1803, %v1818
        %v1821 = vunpack.c.l.s4 1966171168
        %v1822 = vunpack.c.0.s8 %v1821
        %v1823 = vlaneseq
        %v1824 = vshrl.u32 %v1823, 7
        %v1825 = vsub.s32 %v1822, %v1824
        %v1826 = vrot.slane %v1810, %v1825
        %v1828 = vunpack.c.l.s4 1966171168
        %v1829 = vunpack.c.0.s8 %v1828
        %v1830 = vlaneseq
        %v1831 = vshrl.u32 %v1830, 7
        %v1832 = vsub.s32 %v1829, %v1831
        %v1833 = vrot.slane %v1811, %v1832
        %v1835 = vunpack.c.l.s4 1966171168
        %v1836 = vunpack.c.0.s8 %v1835
        %v1837 = vlaneseq
        %v1838 = vshrl.u32 %v1837, 7
        %v1839 = vsub.s32 %v1836, %v1838
        %v1840 = vrot.slane %v1812, %v1839
        %v1841 = vcombine.high %v1819, %v1819
        %v1842 = vcombine.high %v1826, %v1826
        %v1843 = vcombine.high %v1833, %v1833
        %v1844 = vcombine.high %v1840, %v1840
        %v1845 = vcombine.high %v1619, %v1619
        %v1847 = vunpack.c.l.s4 1966171168
        %v1848 = vunpack.c.0.s8 %v1847
        %v1849 = vlaneseq
        %v1850 = vshrl.u32 %v1849, 7
        %v1851 = vsub.s32 %v1848, %v1850
        %v1852 = vrot.slane %v1619, %v1851
        %v1854 = vunpack.c.l.s4 1966171168
        %v1855 = vunpack.c.0.s8 %v1854
        %v1856 = vlaneseq
        %v1857 = vshrl.u32 %v1856, 7
        %v1858 = vsub.s32 %v1855, %v1857
        %v1859 = vrot.slane %v1845, %v1858
        %v1860 = vcombine.high %v1852, %v1852
        %v1861 = vcombine.high %v1859, %v1859
        %v1863 = vunpack.c.l.s4 1966171168
        %v1864 = vunpack.c.0.s8 %v1863
        %v1865 = vlaneseq
        %v1866 = vshrl.u32 %v1865, 7
        %v1867 = vsub.s32 %v1864, %v1866
        %v1868 = vrot.slane %v1852, %v1867
        %v1870 = vunpack.c.l.s4 1966171168
        %v1871 = vunpack.c.0.s8 %v1870
        %v1872 = vlaneseq
        %v1873 = vshrl.u32 %v1872, 7
        %v1874 = vsub.s32 %v1871, %v1873
        %v1875 = vrot.slane %v1859, %v1874
        %v1877 = vunpack.c.l.s4 1966171168
        %v1878 = vunpack.c.0.s8 %v1877
        %v1879 = vlaneseq
        %v1880 = vshrl.u32 %v1879, 7
        %v1881 = vsub.s32 %v1878, %v1880
        %v1882 = vrot.slane %v1860, %v1881
        %v1884 = vunpack.c.l.s4 1966171168
        %v1885 = vunpack.c.0.s8 %v1884
        %v1886 = vlaneseq
        %v1887 = vshrl.u32 %v1886, 7
        %v1888 = vsub.s32 %v1885, %v1887
        %v1889 = vrot.slane %v1861, %v1888
        %v1890 = vcombine.high %v1868, %v1868
        %v1891 = vcombine.high %v1875, %v1875
        %v1892 = vcombine.high %v1882, %v1882
        %v1893 = vcombine.high %v1889, %v1889
        %v1894 = vcombine.high %v1622, %v1622
        %v1896 = vunpack.c.l.s4 1966171168
        %v1897 = vunpack.c.0.s8 %v1896
        %v1898 = vlaneseq
        %v1899 = vshrl.u32 %v1898, 7
        %v1900 = vsub.s32 %v1897, %v1899
        %v1901 = vrot.slane %v1622, %v1900
        %v1903 = vunpack.c.l.s4 1966171168
        %v1904 = vunpack.c.0.s8 %v1903
        %v1905 = vlaneseq
        %v1906 = vshrl.u32 %v1905, 7
        %v1907 = vsub.s32 %v1904, %v1906
        %v1908 = vrot.slane %v1894, %v1907
        %v1909 = vcombine.high %v1901, %v1901
        %v1910 = vcombine.high %v1908, %v1908
        %v1912 = vunpack.c.l.s4 1966171168
        %v1913 = vunpack.c.0.s8 %v1912
        %v1914 = vlaneseq
        %v1915 = vshrl.u32 %v1914, 7
        %v1916 = vsub.s32 %v1913, %v1915
        %v1917 = vrot.slane %v1901, %v1916
        %v1919 = vunpack.c.l.s4 1966171168
        %v1920 = vunpack.c.0.s8 %v1919
        %v1921 = vlaneseq
        %v1922 = vshrl.u32 %v1921, 7
        %v1923 = vsub.s32 %v1920, %v1922
        %v1924 = vrot.slane %v1908, %v1923
        %v1926 = vunpack.c.l.s4 1966171168
        %v1927 = vunpack.c.0.s8 %v1926
        %v1928 = vlaneseq
        %v1929 = vshrl.u32 %v1928, 7
        %v1930 = vsub.s32 %v1927, %v1929
        %v1931 = vrot.slane %v1909, %v1930
        %v1933 = vunpack.c.l.s4 1966171168
        %v1934 = vunpack.c.0.s8 %v1933
        %v1935 = vlaneseq
        %v1936 = vshrl.u32 %v1935, 7
        %v1937 = vsub.s32 %v1934, %v1936
        %v1938 = vrot.slane %v1910, %v1937
        %v1939 = vcombine.high %v1917, %v1917
        %v1940 = vcombine.high %v1924, %v1924
        %v1941 = vcombine.high %v1931, %v1931
        %v1942 = vcombine.high %v1938, %v1938
        %v1943 = vcombine.high %v1627, %v1627
        %v1945 = vunpack.c.l.s4 1966171168
        %v1946 = vunpack.c.0.s8 %v1945
        %v1947 = vlaneseq
        %v1948 = vshrl.u32 %v1947, 7
        %v1949 = vsub.s32 %v1946, %v1948
        %v1950 = vrot.slane %v1627, %v1949
        %v1952 = vunpack.c.l.s4 1966171168
        %v1953 = vunpack.c.0.s8 %v1952
        %v1954 = vlaneseq
        %v1955 = vshrl.u32 %v1954, 7
        %v1956 = vsub.s32 %v1953, %v1955
        %v1957 = vrot.slane %v1943, %v1956
        %v1958 = vcombine.high %v1950, %v1950
        %v1959 = vcombine.high %v1957, %v1957
        %v1961 = vunpack.c.l.s4 1966171168
        %v1962 = vunpack.c.0.s8 %v1961
        %v1963 = vlaneseq
        %v1964 = vshrl.u32 %v1963, 7
        %v1965 = vsub.s32 %v1962, %v1964
        %v1966 = vrot.slane %v1950, %v1965
        %v1968 = vunpack.c.l.s4 1966171168
        %v1969 = vunpack.c.0.s8 %v1968
        %v1970 = vlaneseq
        %v1971 = vshrl.u32 %v1970, 7
        %v1972 = vsub.s32 %v1969, %v1971
        %v1973 = vrot.slane %v1957, %v1972
        %v1975 = vunpack.c.l.s4 1966171168
        %v1976 = vunpack.c.0.s8 %v1975
        %v1977 = vlaneseq
        %v1978 = vshrl.u32 %v1977, 7
        %v1979 = vsub.s32 %v1976, %v1978
        %v1980 = vrot.slane %v1958, %v1979
        %v1982 = vunpack.c.l.s4 1966171168
        %v1983 = vunpack.c.0.s8 %v1982
        %v1984 = vlaneseq
        %v1985 = vshrl.u32 %v1984, 7
        %v1986 = vsub.s32 %v1983, %v1985
        %v1987 = vrot.slane %v1959, %v1986
        %v1988 = vcombine.high %v1966, %v1966
        %v1989 = vcombine.high %v1973, %v1973
        %v1990 = vcombine.high %v1980, %v1980
        %v1991 = vcombine.high %v1987, %v1987
        %v1992 = vcombine.high %v1630, %v1630
        %v1994 = vunpack.c.l.s4 1966171168
        %v1995 = vunpack.c.0.s8 %v1994
        %v1996 = vlaneseq
        %v1997 = vshrl.u32 %v1996, 7
        %v1998 = vsub.s32 %v1995, %v1997
        %v1999 = vrot.slane %v1630, %v1998
        %v2001 = vunpack.c.l.s4 1966171168
        %v2002 = vunpack.c.0.s8 %v2001
        %v2003 = vlaneseq
        %v2004 = vshrl.u32 %v2003, 7
        %v2005 = vsub.s32 %v2002, %v2004
        %v2006 = vrot.slane %v1992, %v2005
        %v2007 = vcombine.high %v1999, %v1999
        %v2008 = vcombine.high %v2006, %v2006
        %v2010 = vunpack.c.l.s4 1966171168
        %v2011 = vunpack.c.0.s8 %v2010
        %v2012 = vlaneseq
        %v2013 = vshrl.u32 %v2012, 7
        %v2014 = vsub.s32 %v2011, %v2013
        %v2015 = vrot.slane %v1999, %v2014
        %v2017 = vunpack.c.l.s4 1966171168
        %v2018 = vunpack.c.0.s8 %v2017
        %v2019 = vlaneseq
        %v2020 = vshrl.u32 %v2019, 7
        %v2021 = vsub.s32 %v2018, %v2020
        %v2022 = vrot.slane %v2006, %v2021
        %v2024 = vunpack.c.l.s4 1966171168
        %v2025 = vunpack.c.0.s8 %v2024
        %v2026 = vlaneseq
        %v2027 = vshrl.u32 %v2026, 7
        %v2028 = vsub.s32 %v2025, %v2027
        %v2029 = vrot.slane %v2007, %v2028
        %v2031 = vunpack.c.l.s4 1966171168
        %v2032 = vunpack.c.0.s8 %v2031
        %v2033 = vlaneseq
        %v2034 = vshrl.u32 %v2033, 7
        %v2035 = vsub.s32 %v2032, %v2034
        %v2036 = vrot.slane %v2008, %v2035
        %v2037 = vcombine.high %v2015, %v2015
        %v2038 = vcombine.high %v2022, %v2022
        %v2039 = vcombine.high %v2029, %v2029
        %v2040 = vcombine.high %v2036, %v2036
        %v2041 = vcombine.high %v1635, %v1635
        %v2043 = vunpack.c.l.s4 1966171168
        %v2044 = vunpack.c.0.s8 %v2043
        %v2045 = vlaneseq
        %v2046 = vshrl.u32 %v2045, 7
        %v2047 = vsub.s32 %v2044, %v2046
        %v2048 = vrot.slane %v1635, %v2047
        %v2050 = vunpack.c.l.s4 1966171168
        %v2051 = vunpack.c.0.s8 %v2050
        %v2052 = vlaneseq
        %v2053 = vshrl.u32 %v2052, 7
        %v2054 = vsub.s32 %v2051, %v2053
        %v2055 = vrot.slane %v2041, %v2054
        %v2056 = vcombine.high %v2048, %v2048
        %v2057 = vcombine.high %v2055, %v2055
        %v2059 = vunpack.c.l.s4 1966171168
        %v2060 = vunpack.c.0.s8 %v2059
        %v2061 = vlaneseq
        %v2062 = vshrl.u32 %v2061, 7
        %v2063 = vsub.s32 %v2060, %v2062
        %v2064 = vrot.slane %v2048, %v2063
        %v2066 = vunpack.c.l.s4 1966171168
        %v2067 = vunpack.c.0.s8 %v2066
        %v2068 = vlaneseq
        %v2069 = vshrl.u32 %v2068, 7
        %v2070 = vsub.s32 %v2067, %v2069
        %v2071 = vrot.slane %v2055, %v2070
        %v2073 = vunpack.c.l.s4 1966171168
        %v2074 = vunpack.c.0.s8 %v2073
        %v2075 = vlaneseq
        %v2076 = vshrl.u32 %v2075, 7
        %v2077 = vsub.s32 %v2074, %v2076
        %v2078 = vrot.slane %v2056, %v2077
        %v2080 = vunpack.c.l.s4 1966171168
        %v2081 = vunpack.c.0.s8 %v2080
        %v2082 = vlaneseq
        %v2083 = vshrl.u32 %v2082, 7
        %v2084 = vsub.s32 %v2081, %v2083
        %v2085 = vrot.slane %v2057, %v2084
        %v2086 = vcombine.high %v2064, %v2064
        %v2087 = vcombine.high %v2071, %v2071
        %v2088 = vcombine.high %v2078, %v2078
        %v2089 = vcombine.high %v2085, %v2085
        %v2090 = vcombine.low %v1672, %v1686
        %v2091 = vcombine.low %v1694, %v1696
        %v2092 = vcombine.low %v1679, %v1693
        %v2093 = vcombine.low %v1695, %v1697
        %v2095 = vunpack.c.l.s4 1966171168
        %v2096 = vunpack.c.0.s8 %v2095
        %v2097 = vlaneseq
        %v2098 = vshrl.u32 %v2097, 7
        %v2099 = vsub.s32 %v2096, %v2098
        %v2100 = vrot.slane %v2090, %v2099
        %v2102 = vunpack.c.l.s4 1966171168
        %v2103 = vunpack.c.0.s8 %v2102
        %v2104 = vlaneseq
        %v2105 = vshrl.u32 %v2104, 7
        %v2106 = vsub.s32 %v2103, %v2105
        %v2107 = vrot.slane %v2091, %v2106
        %v2109 = vunpack.c.l.s4 1966171168
        %v2110 = vunpack.c.0.s8 %v2109
        %v2111 = vlaneseq
        %v2112 = vshrl.u32 %v2111, 7
        %v2113 = vsub.s32 %v2110, %v2112
        %v2114 = vrot.slane %v2092, %v2113
        %v2116 = vunpack.c.l.s4 1966171168
        %v2117 = vunpack.c.0.s8 %v2116
        %v2118 = vlaneseq
        %v2119 = vshrl.u32 %v2118, 7
        %v2120 = vsub.s32 %v2117, %v2119
        %v2121 = vrot.slane %v2093, %v2120
        %v2122 = vcombine.low %v2100, %v2107
        %v2123 = vcombine.low %v2114, %v2121
        %v2125 = vunpack.c.l.s4 1966171168
        %v2126 = vunpack.c.0.s8 %v2125
        %v2127 = vlaneseq
        %v2128 = vshrl.u32 %v2127, 7
        %v2129 = vsub.s32 %v2126, %v2128
        %v2130 = vrot.slane %v2122, %v2129
        %v2132 = vunpack.c.l.s4 1966171168
        %v2133 = vunpack.c.0.s8 %v2132
        %v2134 = vlaneseq
        %v2135 = vshrl.u32 %v2134, 7
        %v2136 = vsub.s32 %v2133, %v2135
        %v2137 = vrot.slane %v2123, %v2136
        %v2138 = vcombine.low %v2130, %v2137
        %v2140 = vunpack.c.l.s4 1966171168
        %v2141 = vunpack.c.0.s8 %v2140
        %v2142 = vlaneseq
        %v2143 = vshrl.u32 %v2142, 7
        %v2144 = vsub.s32 %v2141, %v2143
        %v2145 = vrot.slane %v1721, %v2144
        %v2147 = vunpack.c.l.s4 1966171168
        %v2148 = vunpack.c.0.s8 %v2147
        %v2149 = vlaneseq
        %v2150 = vshrl.u32 %v2149, 7
        %v2151 = vsub.s32 %v2148, %v2150
        %v2152 = vrot.slane %v2145, %v2151
        %v2153 = vcombine.low %v1735, %v1743
        %v2154 = vcombine.low %v1745, %v1728
        %v2155 = vcombine.low %v1742, %v1744
        %v2156 = vcombine.low %v1746, %v1770
        %v2158 = vunpack.c.l.s4 1966171168
        %v2159 = vunpack.c.0.s8 %v2158
        %v2160 = vlaneseq
        %v2161 = vshrl.u32 %v2160, 7
        %v2162 = vsub.s32 %v2159, %v2161
        %v2163 = vrot.slane %v2153, %v2162
        %v2165 = vunpack.c.l.s4 1966171168
        %v2166 = vunpack.c.0.s8 %v2165
        %v2167 = vlaneseq
        %v2168 = vshrl.u32 %v2167, 7
        %v2169 = vsub.s32 %v2166, %v2168
        %v2170 = vrot.slane %v2154, %v2169
        %v2172 = vunpack.c.l.s4 1966171168
        %v2173 = vunpack.c.0.s8 %v2172
        %v2174 = vlaneseq
        %v2175 = vshrl.u32 %v2174, 7
        %v2176 = vsub.s32 %v2173, %v2175
        %v2177 = vrot.slane %v2155, %v2176
        %v2179 = vunpack.c.l.s4 1966171168
        %v2180 = vunpack.c.0.s8 %v2179
        %v2181 = vlaneseq
        %v2182 = vshrl.u32 %v2181, 7
        %v2183 = vsub.s32 %v2180, %v2182
        %v2184 = vrot.slane %v2156, %v2183
        %v2185 = vcombine.low %v2163, %v2170
        %v2186 = vcombine.low %v2177, %v2184
        %v2188 = vunpack.c.l.s4 1966171168
        %v2189 = vunpack.c.0.s8 %v2188
        %v2190 = vlaneseq
        %v2191 = vshrl.u32 %v2190, 7
        %v2192 = vsub.s32 %v2189, %v2191
        %v2193 = vrot.slane %v2185, %v2192
        %v2195 = vunpack.c.l.s4 1966171168
        %v2196 = vunpack.c.0.s8 %v2195
        %v2197 = vlaneseq
        %v2198 = vshrl.u32 %v2197, 7
        %v2199 = vsub.s32 %v2196, %v2198
        %v2200 = vrot.slane %v2186, %v2199
        %v2201 = vcombine.low %v2193, %v2200
        %v2203 = vunpack.c.l.s4 1966171168
        %v2204 = vunpack.c.0.s8 %v2203
        %v2205 = vlaneseq
        %v2206 = vshrl.u32 %v2205, 7
        %v2207 = vsub.s32 %v2204, %v2206
        %v2208 = vrot.slane %v1784, %v2207
        %v2210 = vunpack.c.l.s4 1966171168
        %v2211 = vunpack.c.0.s8 %v2210
        %v2212 = vlaneseq
        %v2213 = vshrl.u32 %v2212, 7
        %v2214 = vsub.s32 %v2211, %v2213
        %v2215 = vrot.slane %v2208, %v2214
        %v2216 = vcombine.low %v1792, %v1794
        %v2217 = vcombine.low %v1777, %v1791
        %v2218 = vcombine.low %v1793, %v1795
        %v2219 = vcombine.low %v1819, %v1833
        %v2221 = vunpack.c.l.s4 1966171168
        %v2222 = vunpack.c.0.s8 %v2221
        %v2223 = vlaneseq
        %v2224 = vshrl.u32 %v2223, 7
        %v2225 = vsub.s32 %v2222, %v2224
        %v2226 = vrot.slane %v2216, %v2225
        %v2228 = vunpack.c.l.s4 1966171168
        %v2229 = vunpack.c.0.s8 %v2228
        %v2230 = vlaneseq
        %v2231 = vshrl.u32 %v2230, 7
        %v2232 = vsub.s32 %v2229, %v2231
        %v2233 = vrot.slane %v2217, %v2232
        %v2235 = vunpack.c.l.s4 1966171168
        %v2236 = vunpack.c.0.s8 %v2235
        %v2237 = vlaneseq
        %v2238 = vshrl.u32 %v2237, 7
        %v2239 = vsub.s32 %v2236, %v2238
        %v2240 = vrot.slane %v2218, %v2239
        %v2242 = vunpack.c.l.s4 1966171168
        %v2243 = vunpack.c.0.s8 %v2242
        %v2244 = vlaneseq
        %v2245 = vshrl.u32 %v2244, 7
        %v2246 = vsub.s32 %v2243, %v2245
        %v2247 = vrot.slane %v2219, %v2246
        %v2248 = vcombine.low %v2226, %v2233
        %v2249 = vcombine.low %v2240, %v2247
        %v2251 = vunpack.c.l.s4 1966171168
        %v2252 = vunpack.c.0.s8 %v2251
        %v2253 = vlaneseq
        %v2254 = vshrl.u32 %v2253, 7
        %v2255 = vsub.s32 %v2252, %v2254
        %v2256 = vrot.slane %v2248, %v2255
        %v2258 = vunpack.c.l.s4 1966171168
        %v2259 = vunpack.c.0.s8 %v2258
        %v2260 = vlaneseq
        %v2261 = vshrl.u32 %v2260, 7
        %v2262 = vsub.s32 %v2259, %v2261
        %v2263 = vrot.slane %v2249, %v2262
        %v2264 = vcombine.low %v2256, %v2263
        %v2266 = vunpack.c.l.s4 1966171168
        %v2267 = vunpack.c.0.s8 %v2266
        %v2268 = vlaneseq
        %v2269 = vshrl.u32 %v2268, 7
        %v2270 = vsub.s32 %v2267, %v2269
        %v2271 = vrot.slane %v1841, %v2270
        %v2273 = vunpack.c.l.s4 1966171168
        %v2274 = vunpack.c.0.s8 %v2273
        %v2275 = vlaneseq
        %v2276 = vshrl.u32 %v2275, 7
        %v2277 = vsub.s32 %v2274, %v2276
        %v2278 = vrot.slane %v2271, %v2277
        %v2279 = vcombine.low %v1843, %v1826
        %v2280 = vcombine.low %v1840, %v1842
        %v2281 = vcombine.low %v1844, %v1868
        %v2282 = vcombine.low %v1882, %v1890
        %v2284 = vunpack.c.l.s4 1966171168
        %v2285 = vunpack.c.0.s8 %v2284
        %v2286 = vlaneseq
        %v2287 = vshrl.u32 %v2286, 7
        %v2288 = vsub.s32 %v2285, %v2287
        %v2289 = vrot.slane %v2279, %v2288
        %v2291 = vunpack.c.l.s4 1966171168
        %v2292 = vunpack.c.0.s8 %v2291
        %v2293 = vlaneseq
        %v2294 = vshrl.u32 %v2293, 7
        %v2295 = vsub.s32 %v2292, %v2294
        %v2296 = vrot.slane %v2280, %v2295
        %v2298 = vunpack.c.l.s4 1966171168
        %v2299 = vunpack.c.0.s8 %v2298
        %v2300 = vlaneseq
        %v2301 = vshrl.u32 %v2300, 7
        %v2302 = vsub.s32 %v2299, %v2301
        %v2303 = vrot.slane %v2281, %v2302
        %v2305 = vunpack.c.l.s4 1966171168
        %v2306 = vunpack.c.0.s8 %v2305
        %v2307 = vlaneseq
        %v2308 = vshrl.u32 %v2307, 7
        %v2309 = vsub.s32 %v2306, %v2308
        %v2310 = vrot.slane %v2282, %v2309
        %v2311 = vcombine.low %v2289, %v2296
        %v2312 = vcombine.low %v2303, %v2310
        %v2314 = vunpack.c.l.s4 1966171168
        %v2315 = vunpack.c.0.s8 %v2314
        %v2316 = vlaneseq
        %v2317 = vshrl.u32 %v2316, 7
        %v2318 = vsub.s32 %v2315, %v2317
        %v2319 = vrot.slane %v2311, %v2318
        %v2321 = vunpack.c.l.s4 1966171168
        %v2322 = vunpack.c.0.s8 %v2321
        %v2323 = vlaneseq
        %v2324 = vshrl.u32 %v2323, 7
        %v2325 = vsub.s32 %v2322, %v2324
        %v2326 = vrot.slane %v2312, %v2325
        %v2327 = vcombine.low %v2319, %v2326
        %v2329 = vunpack.c.l.s4 1966171168
        %v2330 = vunpack.c.0.s8 %v2329
        %v2331 = vlaneseq
        %v2332 = vshrl.u32 %v2331, 7
        %v2333 = vsub.s32 %v2330, %v2332
        %v2334 = vrot.slane %v1892, %v2333
        %v2336 = vunpack.c.l.s4 1966171168
        %v2337 = vunpack.c.0.s8 %v2336
        %v2338 = vlaneseq
        %v2339 = vshrl.u32 %v2338, 7
        %v2340 = vsub.s32 %v2337, %v2339
        %v2341 = vrot.slane %v2334, %v2340
        %v2342 = vcombine.low %v1875, %v1889
        %v2343 = vcombine.low %v1891, %v1893
        %v2344 = vcombine.low %v1917, %v1931
        %v2345 = vcombine.low %v1939, %v1941
        %v2347 = vunpack.c.l.s4 1966171168
        %v2348 = vunpack.c.0.s8 %v2347
        %v2349 = vlaneseq
        %v2350 = vshrl.u32 %v2349, 7
        %v2351 = vsub.s32 %v2348, %v2350
        %v2352 = vrot.slane %v2342, %v2351
        %v2354 = vunpack.c.l.s4 1966171168
        %v2355 = vunpack.c.0.s8 %v2354
        %v2356 = vlaneseq
        %v2357 = vshrl.u32 %v2356, 7
        %v2358 = vsub.s32 %v2355, %v2357
        %v2359 = vrot.slane %v2343, %v2358
        %v2361 = vunpack.c.l.s4 1966171168
        %v2362 = vunpack.c.0.s8 %v2361
        %v2363 = vlaneseq
        %v2364 = vshrl.u32 %v2363, 7
        %v2365 = vsub.s32 %v2362, %v2364
        %v2366 = vrot.slane %v2344, %v2365
        %v2368 = vunpack.c.l.s4 1966171168
        %v2369 = vunpack.c.0.s8 %v2368
        %v2370 = vlaneseq
        %v2371 = vshrl.u32 %v2370, 7
        %v2372 = vsub.s32 %v2369, %v2371
        %v2373 = vrot.slane %v2345, %v2372
        %v2374 = vcombine.low %v2352, %v2359
        %v2375 = vcombine.low %v2366, %v2373
        %v2377 = vunpack.c.l.s4 1966171168
        %v2378 = vunpack.c.0.s8 %v2377
        %v2379 = vlaneseq
        %v2380 = vshrl.u32 %v2379, 7
        %v2381 = vsub.s32 %v2378, %v2380
        %v2382 = vrot.slane %v2374, %v2381
        %v2384 = vunpack.c.l.s4 1966171168
        %v2385 = vunpack.c.0.s8 %v2384
        %v2386 = vlaneseq
        %v2387 = vshrl.u32 %v2386, 7
        %v2388 = vsub.s32 %v2385, %v2387
        %v2389 = vrot.slane %v2375, %v2388
        %v2390 = vcombine.low %v2382, %v2389
        %v2392 = vunpack.c.l.s4 1966171168
        %v2393 = vunpack.c.0.s8 %v2392
        %v2394 = vlaneseq
        %v2395 = vshrl.u32 %v2394, 7
        %v2396 = vsub.s32 %v2393, %v2395
        %v2397 = vrot.slane %v1924, %v2396
        %v2399 = vunpack.c.l.s4 1966171168
        %v2400 = vunpack.c.0.s8 %v2399
        %v2401 = vlaneseq
        %v2402 = vshrl.u32 %v2401, 7
        %v2403 = vsub.s32 %v2400, %v2402
        %v2404 = vrot.slane %v2397, %v2403
        %v2405 = vcombine.low %v1938, %v1940
        %v2406 = vcombine.low %v1942, %v1966
        %v2407 = vcombine.low %v1980, %v1988
        %v2408 = vcombine.low %v1990, %v1973
        %v2410 = vunpack.c.l.s4 1966171168
        %v2411 = vunpack.c.0.s8 %v2410
        %v2412 = vlaneseq
        %v2413 = vshrl.u32 %v2412, 7
        %v2414 = vsub.s32 %v2411, %v2413
        %v2415 = vrot.slane %v2405, %v2414
        %v2417 = vunpack.c.l.s4 1966171168
        %v2418 = vunpack.c.0.s8 %v2417
        %v2419 = vlaneseq
        %v2420 = vshrl.u32 %v2419, 7
        %v2421 = vsub.s32 %v2418, %v2420
        %v2422 = vrot.slane %v2406, %v2421
        %v2424 = vunpack.c.l.s4 1966171168
        %v2425 = vunpack.c.0.s8 %v2424
        %v2426 = vlaneseq
        %v2427 = vshrl.u32 %v2426, 7
        %v2428 = vsub.s32 %v2425, %v2427
        %v2429 = vrot.slane %v2407, %v2428
        %v2431 = vunpack.c.l.s4 1966171168
        %v2432 = vunpack.c.0.s8 %v2431
        %v2433 = vlaneseq
        %v2434 = vshrl.u32 %v2433, 7
        %v2435 = vsub.s32 %v2432, %v2434
        %v2436 = vrot.slane %v2408, %v2435
        %v2437 = vcombine.low %v2415, %v2422
        %v2438 = vcombine.low %v2429, %v2436
        %v2440 = vunpack.c.l.s4 1966171168
        %v2441 = vunpack.c.0.s8 %v2440
        %v2442 = vlaneseq
        %v2443 = vshrl.u32 %v2442, 7
        %v2444 = vsub.s32 %v2441, %v2443
        %v2445 = vrot.slane %v2437, %v2444
        %v2447 = vunpack.c.l.s4 1966171168
        %v2448 = vunpack.c.0.s8 %v2447
        %v2449 = vlaneseq
        %v2450 = vshrl.u32 %v2449, 7
        %v2451 = vsub.s32 %v2448, %v2450
        %v2452 = vrot.slane %v2438, %v2451
        %v2453 = vcombine.low %v2445, %v2452
        %v2455 = vunpack.c.l.s4 1966171168
        %v2456 = vunpack.c.0.s8 %v2455
        %v2457 = vlaneseq
        %v2458 = vshrl.u32 %v2457, 7
        %v2459 = vsub.s32 %v2456, %v2458
        %v2460 = vrot.slane %v1987, %v2459
        %v2462 = vunpack.c.l.s4 1966171168
        %v2463 = vunpack.c.0.s8 %v2462
        %v2464 = vlaneseq
        %v2465 = vshrl.u32 %v2464, 7
        %v2466 = vsub.s32 %v2463, %v2465
        %v2467 = vrot.slane %v2460, %v2466
        %v2468 = vcombine.low %v1989, %v1991
        %v2469 = vcombine.low %v2015, %v2029
        %v2470 = vcombine.low %v2037, %v2039
        %v2471 = vcombine.low %v2022, %v2036
        %v2473 = vunpack.c.l.s4 1966171168
        %v2474 = vunpack.c.0.s8 %v2473
        %v2475 = vlaneseq
        %v2476 = vshrl.u32 %v2475, 7
        %v2477 = vsub.s32 %v2474, %v2476
        %v2478 = vrot.slane %v2468, %v2477
        %v2480 = vunpack.c.l.s4 1966171168
        %v2481 = vunpack.c.0.s8 %v2480
        %v2482 = vlaneseq
        %v2483 = vshrl.u32 %v2482, 7
        %v2484 = vsub.s32 %v2481, %v2483
        %v2485 = vrot.slane %v2469, %v2484
        %v2487 = vunpack.c.l.s4 1966171168
        %v2488 = vunpack.c.0.s8 %v2487
        %v2489 = vlaneseq
        %v2490 = vshrl.u32 %v2489, 7
        %v2491 = vsub.s32 %v2488, %v2490
        %v2492 = vrot.slane %v2470, %v2491
        %v2494 = vunpack.c.l.s4 1966171168
        %v2495 = vunpack.c.0.s8 %v2494
        %v2496 = vlaneseq
        %v2497 = vshrl.u32 %v2496, 7
        %v2498 = vsub.s32 %v2495, %v2497
        %v2499 = vrot.slane %v2471, %v2498
        %v2500 = vcombine.low %v2478, %v2485
        %v2501 = vcombine.low %v2492, %v2499
        %v2503 = vunpack.c.l.s4 1966171168
        %v2504 = vunpack.c.0.s8 %v2503
        %v2505 = vlaneseq
        %v2506 = vshrl.u32 %v2505, 7
        %v2507 = vsub.s32 %v2504, %v2506
        %v2508 = vrot.slane %v2500, %v2507
        %v2510 = vunpack.c.l.s4 1966171168
        %v2511 = vunpack.c.0.s8 %v2510
        %v2512 = vlaneseq
        %v2513 = vshrl.u32 %v2512, 7
        %v2514 = vsub.s32 %v2511, %v2513
        %v2515 = vrot.slane %v2501, %v2514
        %v2516 = vcombine.low %v2508, %v2515
        %v2518 = vunpack.c.l.s4 1966171168
        %v2519 = vunpack.c.0.s8 %v2518
        %v2520 = vlaneseq
        %v2521 = vshrl.u32 %v2520, 7
        %v2522 = vsub.s32 %v2519, %v2521
        %v2523 = vrot.slane %v2038, %v2522
        %v2525 = vunpack.c.l.s4 1966171168
        %v2526 = vunpack.c.0.s8 %v2525
        %v2527 = vlaneseq
        %v2528 = vshrl.u32 %v2527, 7
        %v2529 = vsub.s32 %v2526, %v2528
        %v2530 = vrot.slane %v2523, %v2529
        %v2531 = vcombine.low %v2040, %v2064
        %v2532 = vcombine.low %v2078, %v2086
        %v2533 = vcombine.low %v2088, %v2071
        %v2534 = vcombine.low %v2085, %v2087
        %v2536 = vunpack.c.l.s4 1966171168
        %v2537 = vunpack.c.0.s8 %v2536
        %v2538 = vlaneseq
        %v2539 = vshrl.u32 %v2538, 7
        %v2540 = vsub.s32 %v2537, %v2539
        %v2541 = vrot.slane %v2531, %v2540
        %v2543 = vunpack.c.l.s4 1966171168
        %v2544 = vunpack.c.0.s8 %v2543
        %v2545 = vlaneseq
        %v2546 = vshrl.u32 %v2545, 7
        %v2547 = vsub.s32 %v2544, %v2546
        %v2548 = vrot.slane %v2532, %v2547
        %v2550 = vunpack.c.l.s4 1966171168
        %v2551 = vunpack.c.0.s8 %v2550
        %v2552 = vlaneseq
        %v2553 = vshrl.u32 %v2552, 7
        %v2554 = vsub.s32 %v2551, %v2553
        %v2555 = vrot.slane %v2533, %v2554
        %v2557 = vunpack.c.l.s4 1966171168
        %v2558 = vunpack.c.0.s8 %v2557
        %v2559 = vlaneseq
        %v2560 = vshrl.u32 %v2559, 7
        %v2561 = vsub.s32 %v2558, %v2560
        %v2562 = vrot.slane %v2534, %v2561
        %v2563 = vcombine.low %v2541, %v2548
        %v2564 = vcombine.low %v2555, %v2562
        %v2566 = vunpack.c.l.s4 1966171168
        %v2567 = vunpack.c.0.s8 %v2566
        %v2568 = vlaneseq
        %v2569 = vshrl.u32 %v2568, 7
        %v2570 = vsub.s32 %v2567, %v2569
        %v2571 = vrot.slane %v2563, %v2570
        %v2573 = vunpack.c.l.s4 1966171168
        %v2574 = vunpack.c.0.s8 %v2573
        %v2575 = vlaneseq
        %v2576 = vshrl.u32 %v2575, 7
        %v2577 = vsub.s32 %v2574, %v2576
        %v2578 = vrot.slane %v2564, %v2577
        %v2579 = vcombine.low %v2571, %v2578
        %v2581 = vunpack.c.l.s4 1966171168
        %v2582 = vunpack.c.0.s8 %v2581
        %v2583 = vlaneseq
        %v2584 = vshrl.u32 %v2583, 7
        %v2585 = vsub.s32 %v2582, %v2584
        %v2586 = vrot.slane %v2089, %v2585
        %v2588 = vunpack.c.l.s4 1966171168
        %v2589 = vunpack.c.0.s8 %v2588
        %v2590 = vlaneseq
        %v2591 = vshrl.u32 %v2590, 7
        %v2592 = vsub.s32 %v2589, %v2591
        %v2593 = vrot.slane %v2586, %v2592
        %vm2610 = vcmask 1040384
        %v2611 = vsel %vm2610, %v2152, -inf
        %v2612 = vmax.f32 %v2138, %v2611
        %v2613 = vrot.slane %v2612, 4
        %v2614 = vmax.f32 %v2612, %v2613
        %v2615 = vrot.slane %v2614, 2
        %v2616 = vmax.f32 %v2614, %v2615
        %v2617 = vrot.slane %v2616, 1
        %v2618 = vmax.f32 %v2616, %v2617
        %v2619 = vsel %vm2610, %v2215, -inf
        %v2620 = vmax.f32 %v2201, %v2619
        %v2621 = vrot.slane %v2620, 4
        %v2622 = vmax.f32 %v2620, %v2621
        %v2623 = vrot.slane %v2622, 2
        %v2624 = vmax.f32 %v2622, %v2623
        %v2625 = vrot.slane %v2624, 1
        %v2626 = vmax.f32 %v2624, %v2625
        %v2627 = vsel %vm2610, %v2278, -inf
        %v2628 = vmax.f32 %v2264, %v2627
        %v2629 = vrot.slane %v2628, 4
        %v2630 = vmax.f32 %v2628, %v2629
        %v2631 = vrot.slane %v2630, 2
        %v2632 = vmax.f32 %v2630, %v2631
        %v2633 = vrot.slane %v2632, 1
        %v2634 = vmax.f32 %v2632, %v2633
        %v2635 = vsel %vm2610, %v2341, -inf
        %v2636 = vmax.f32 %v2327, %v2635
        %v2637 = vrot.slane %v2636, 4
        %v2638 = vmax.f32 %v2636, %v2637
        %v2639 = vrot.slane %v2638, 2
        %v2640 = vmax.f32 %v2638, %v2639
        %v2641 = vrot.slane %v2640, 1
        %v2642 = vmax.f32 %v2640, %v2641
        %v2643 = vsel %vm2610, %v2404, -inf
        %v2644 = vmax.f32 %v2390, %v2643
        %v2645 = vrot.slane %v2644, 4
        %v2646 = vmax.f32 %v2644, %v2645
        %v2647 = vrot.slane %v2646, 2
        %v2648 = vmax.f32 %v2646, %v2647
        %v2649 = vrot.slane %v2648, 1
        %v2650 = vmax.f32 %v2648, %v2649
        %v2651 = vsel %vm2610, %v2467, -inf
        %v2652 = vmax.f32 %v2453, %v2651
        %v2653 = vrot.slane %v2652, 4
        %v2654 = vmax.f32 %v2652, %v2653
        %v2655 = vrot.slane %v2654, 2
        %v2656 = vmax.f32 %v2654, %v2655
        %v2657 = vrot.slane %v2656, 1
        %v2658 = vmax.f32 %v2656, %v2657
        %v2659 = vsel %vm2610, %v2530, -inf
        %v2660 = vmax.f32 %v2516, %v2659
        %v2661 = vrot.slane %v2660, 4
        %v2662 = vmax.f32 %v2660, %v2661
        %v2663 = vrot.slane %v2662, 2
        %v2664 = vmax.f32 %v2662, %v2663
        %v2665 = vrot.slane %v2664, 1
        %v2666 = vmax.f32 %v2664, %v2665
        %v2667 = vsel %vm2610, %v2593, -inf
        %v2668 = vmax.f32 %v2579, %v2667
        %v2669 = vrot.slane %v2668, 4
        %v2670 = vmax.f32 %v2668, %v2669
        %v2671 = vrot.slane %v2670, 2
        %v2672 = vmax.f32 %v2670, %v2671
        %v2673 = vrot.slane %v2672, 1
        %v2674 = vmax.f32 %v2672, %v2673
        %v2675 = vld [vmem:[%s2] sm:$0x1]
        %v2677 = vlaneseq
        %v2678 = vshrl.u32 %v2677, 7
        %v2679 = vsub.s32 0, %v2678
        %v2680 = vrot.slane %v2675, %v2679
        %v2682 = vadd.f32 %v2618, %v2680
        %v2683 = vadd.f32 %v2626, %v2680
        %v2684 = vadd.f32 %v2634, %v2680
        %v2685 = vadd.f32 %v2642, %v2680
        %v2686 = vadd.f32 %v2650, %v2680
        %v2687 = vadd.f32 %v2658, %v2680
        %v2688 = vadd.f32 %v2666, %v2680
        %v2689 = vadd.f32 %v2674, %v2680
        %v2690 = vmax.f32 %v2682, 0.0
        %v2691 = vmax.f32 %v2683, 0.0
        %v2692 = vmax.f32 %v2684, 0.0
        %v2693 = vmax.f32 %v2685, 0.0
        %v2694 = vmax.f32 %v2686, 0.0
        %v2695 = vmax.f32 %v2687, 0.0
        %v2696 = vmax.f32 %v2688, 0.0
        %v2697 = vmax.f32 %v2689, 0.0
        %v2698 = vpack.c.bf16 %v2690, %v2690
        %v2699 = vpack.c.bf16 %v2691, %v2691
        %v2700 = vpack.c.bf16 %v2692, %v2692
        %v2701 = vpack.c.bf16 %v2693, %v2693
        %v2702 = vpack.c.bf16 %v2694, %v2694
        %v2703 = vpack.c.bf16 %v2695, %v2695
        %v2704 = vpack.c.bf16 %v2696, %v2696
        %v2705 = vpack.c.bf16 %v2697, %v2697
        %v2706 = vld [vmem:[%s4] sm:$0xf]
        %v2707 = vld [vmem:[%s4 + $0x4] sm:$0xf]
        %v2708 = vld [vmem:[%s4 + $0x8] sm:$0xf]
        %v2709 = vld [vmem:[%s4 + $0xc] sm:$0xf]
        %v2710 = vld [vmem:[%s4 + $0x10] sm:$0xf]
        %v2711 = vld [vmem:[%s4 + $0x14] sm:$0xf]
        %v2712 = vld [vmem:[%s4 + $0x18] sm:$0xf]
        %v2713 = vld [vmem:[%s4 + $0x1c] sm:$0xf]
        %v2714 = vld [vmem:[%s4 + $0x20] sm:$0xf]
        %v2715 = vld [vmem:[%s4 + $0x24] sm:$0xf]
        %v2716 = vld [vmem:[%s4 + $0x28] sm:$0xf]
        %v2717 = vld [vmem:[%s4 + $0x2c] sm:$0xf]
        %v2718 = vld [vmem:[%s4 + $0x30] sm:$0xf]
        %v2719 = vld [vmem:[%s4 + $0x34] sm:$0xf]
        %v2720 = vld [vmem:[%s4 + $0x38] sm:$0xf]
        %v2721 = vld [vmem:[%s4 + $0x3c] sm:$0xf]
        %v2722 = vld [vmem:[%s5] sm:$0x1]
        %v2724 = vlaneseq
        %v2725 = vshrl.u32 %v2724, 7
        %v2726 = vsub.s32 0, %v2725
        %v2727 = vrot.slane %v2722, %v2726
        %v2737 = vunpack.c.l.b16 %v2698
        %v2738 = vunpack.c.l.b16 %v2699
        %v2739 = vunpack.c.l.b16 %v2700
        %v2740 = vunpack.c.l.b16 %v2701
        %v2741 = vunpack.c.l.b16 %v2702
        %v2742 = vunpack.c.l.b16 %v2703
        %v2743 = vunpack.c.l.b16 %v2704
        %v2744 = vunpack.c.l.b16 %v2705
        %v2745 = vrot.slane %v2738, 7
        %vm2746 = vcmask 1041409
        %v2747 = vsel %vm2746, %v2745, %v2737
        %v2748 = vrot.slane %v2739, 6
        %vm2749 = vcmask 1042434
        %v2750 = vsel %vm2749, %v2748, %v2747
        %v2751 = vrot.slane %v2740, 5
        %vm2752 = vcmask 1043459
        %v2753 = vsel %vm2752, %v2751, %v2750
        %v2754 = vrot.slane %v2741, 4
        %vm2755 = vcmask 1044484
        %v2756 = vsel %vm2755, %v2754, %v2753
        %v2757 = vrot.slane %v2742, 3
        %vm2758 = vcmask 1045509
        %v2759 = vsel %vm2758, %v2757, %v2756
        %v2760 = vrot.slane %v2743, 2
        %vm2761 = vcmask 1046534
        %v2762 = vsel %vm2761, %v2760, %v2759
        %v2763 = vrot.slane %v2744, 1
        %vm2764 = vcmask 1047559
        %v2765 = vsel %vm2764, %v2763, %v2762
        %v2766 = vpack.c.b16 %v2765, %v2765
        %v2784 = vunpack.c.l.b16 %v2706
        %v2785 = vunpack.c.l.b16 %v2707
        %v2786 = vunpack.c.l.b16 %v2708
        %v2787 = vunpack.c.l.b16 %v2709
        %v2788 = vunpack.c.l.b16 %v2710
        %v2789 = vunpack.c.l.b16 %v2711
        %v2790 = vunpack.c.l.b16 %v2712
        %v2791 = vunpack.c.l.b16 %v2713
        %v2792 = vunpack.c.l.b16 %v2714
        %v2793 = vunpack.c.l.b16 %v2715
        %v2794 = vunpack.c.l.b16 %v2716
        %v2795 = vunpack.c.l.b16 %v2717
        %v2796 = vunpack.c.l.b16 %v2718
        %v2797 = vunpack.c.l.b16 %v2719
        %v2798 = vunpack.c.l.b16 %v2720
        %v2799 = vunpack.c.l.b16 %v2721
        %v2800 = vpack.c.b16 %v2785, %v2784
        %v2801 = vpack.c.b16 %v2787, %v2786
        %v2802 = vpack.c.b16 %v2789, %v2788
        %v2803 = vpack.c.b16 %v2791, %v2790
        %v2804 = vpack.c.b16 %v2793, %v2792
        %v2805 = vpack.c.b16 %v2795, %v2794
        %v2806 = vpack.c.b16 %v2797, %v2796
        %v2807 = vpack.c.b16 %v2799, %v2798
        %2816 = vmatprep.subr.bf16.mxu0 0
        %2817 = vmatpush1.bf16.msra.mxu0 %v2807
        %2818 = vmatprep.subr.bf16.mxu0 0
        %2819 = vmatpush1.bf16.msra.mxu0 %v2806
        %2820 = vmatprep.subr.bf16.mxu0 0
        %2821 = vmatpush1.bf16.msra.mxu0 %v2805
        %2822 = vmatprep.subr.bf16.mxu0 0
        %2823 = vmatpush1.bf16.msra.mxu0 %v2804
        %2824 = vmatprep.subr.bf16.mxu0 0
        %2825 = vmatpush1.bf16.msra.mxu0 %v2803
        %2826 = vmatprep.subr.bf16.mxu0 0
        %2827 = vmatpush1.bf16.msra.mxu0 %v2802
        %2828 = vmatprep.subr.bf16.mxu0 0
        %2829 = vmatpush1.bf16.msra.mxu0 %v2801
        %2830 = vmatprep.subr.bf16.mxu0 0
        %2831 = vmatpush1.bf16.msra.mxu0 %v2800
        %2832 = vmatprep.subr.bf16.mxu0 0
        %2833 = vmatpush2.bf16.msra.mxu0 0
        %2834 = vmatprep.subr.bf16.mxu0 0
        %2835 = vmatpush2.bf16.msra.mxu0 0
        %2836 = vmatprep.subr.bf16.mxu0 0
        %2837 = vmatpush2.bf16.msra.mxu0 0
        %2838 = vmatprep.subr.bf16.mxu0 0
        %2839 = vmatpush2.bf16.msra.mxu0 0
        %2840 = vmatprep.subr.bf16.mxu0 0
        %2841 = vmatpush2.bf16.msra.mxu0 0
        %2842 = vmatprep.subr.bf16.mxu0 0
        %2843 = vmatpush2.bf16.msra.mxu0 0
        %2844 = vmatprep.subr.bf16.mxu0 0
        %2845 = vmatpush2.bf16.msra.mxu0 0
        %2846 = vmatprep.subr.bf16.mxu0 0
        %2847 = vmatpush2.bf16.msra.mxu0 0
        %2848 = vmatprep.mubr.bf16.mxu0 0
        %2849 = vmatmul.mubr.bf16.gmra.mxu0 %v2766
        %v2850 = vpop.f32.mrf.mxu0
        %v2851 = vadd.f32 %v2727, %v2850
        %v2852 = vpop.f32.mrf.mxu0
        %v2853 = vpop.f32.mrf.mxu0
        %v2854 = vpop.f32.mrf.mxu0
        %2855 = vdwg.mxu0
        %2856 = vmax.xlane.f32.xlu0 %v2851
        %v2857 = vpop.xlane.xlu0 %2856
        %v2858 = vsub.f32 %v2851, %v2857
        %v2859 = vmul.f32 %v2858, 1.442695
        %v2860 = vpow.pop %v2859
        %2861 = vadd.xlane.f32.xlu0 %v2860
        %v2862 = vpop.xlane.xlu0 %2861
        %v2863 = vlog2.pop %v2862
        %v2864 = vmul.f32 %v2863, 0.6931472
        %v2865 = vsub.f32 %v2858, %v2864
        %2866 = vst [vmem:[%s247] sm:$0xff] %v2865
        %s2867 = sand.u32 %s159, 1
        %s2868 = scalar_lea.sflag [#allocation3], %s2867
        %s2869 = sand.u32 %s159, 1
        %s2870 = smul.addr %s2869, 8
        %s2871 = scalar_lea.vmem [#allocation2], %s2870
        // Predicated region
        $region45: #{tpu_custom_call.1} parent=43 // pred_check
          %p2872 = pneg %p169
        $region46: #{tpu_custom_call.1} parent=43 // pred_check_branch
          %2874 = sbr.rel (%p2872) target = $region48
        $region47: #{tpu_custom_call.1} parent=43 // pred_region
          %s2876 = ssub.s32 128, 128
          %2877 = vsyncadd %s2868, %s2876
          %s2878 = smul.addr %s20, 128
          %s2879 = scalar_lea.hbm %s6, %s2878
          %s2881 = sshll.u32 %s2871, 4
          %s2882 = int_to_ptr.vmem [resolvable:$true] %s2881
          %2884 = dma.vmem_to_hbm [thread:$0]  %s2882, 128, %s2879, %s2868
        $region48: #{tpu_custom_call.1} parent=43 // pred_fallthru
          _
      $region44: #{tpu_custom_call.1} parent=5 // pred_fallthru
        _
      %p2885 = scmp.le.s32.totalorder 2, %s15
      // Predicated region
      $region49: #{tpu_custom_call.1} parent=5 // pred_check
        %p2886 = pneg %p2885
      $region50: #{tpu_custom_call.1} parent=5 // pred_check_branch
        %2888 = sbr.rel (%p2886) target = $region52
      $region51: #{tpu_custom_call.1} parent=5 // pred_region
        %s2889 = ssub.s32 %s15, 2
        // Predicated region
        $region53: #{tpu_custom_call.1} parent=51 // pred_check
          %p2890 = pneg %p175
        $region54: #{tpu_custom_call.1} parent=51 // pred_check_branch
          %2892 = sbr.rel (%p2890) target = $region56
        $region55: #{tpu_custom_call.1} parent=51 // pred_region
          %s2893 = sand.u32 %s160, 1
          %s2894 = scalar_lea.sflag [#allocation3], %s2893
          %s2895 = sand.u32 %s160, 1
          %s2896 = smul.addr %s2895, 8
          %s2897 = scalar_lea.vmem [#allocation2], %s2896
          %2898 = dma.done %s2894, 128
        $region56: #{tpu_custom_call.1} parent=51 // pred_fallthru
          _
      $region52: #{tpu_custom_call.1} parent=5 // pred_fallthru
        _
    $region6: #{tpu_custom_call.1} parent=1 // loop_footer
      %s19 = sadd.s32 1, %s15
    $region7: #{tpu_custom_call.1} parent=1 // loop_footer_branch
      %14 = sbr.rel target = $region3
    $region8: #{tpu_custom_call.1} parent=1 // loop_exit
      _
    %2899 = vsyncpa [#allocation3], 1
    %s2900 = scalar_lea.sflag [#allocation3], 1
    %2901 = vsyncpa %s2900, 1

</llo_original>
